<compile_context>
chip_gen: v7x
topology: tpu7x:2x2x1
jax: 0.10.0
libtpu: 0.0.40
codegen_flags: <defaults>
</compile_context>

<pallas_src>
import numpy as np

import jax
import jax.numpy as jnp
from jax.experimental import pallas as pl
from jax.experimental.pallas import tpu as pltpu

# ----------------------------- configuration --------------------------------
B, N1, N2 = 2, 16, 16        # batch, grid height, grid width
DY = 2                       # y dimensionality
C_IN = 2 * DY                # resizer input channels: [y*mc, mc_]
H = 32                       # conv-net channels
K = 3                        # conv kernel size
PAD = (K - 1) // 2
R = B * N1 * N2              # flattened (b, i, j) positions -> lane axis

TAPS = tuple((di, dj) for di in range(-PAD, PAD + 1) for dj in range(-PAD, PAD + 1))


# ------------------------------- kernel -------------------------------------
def gridded_convcnp_kernel(yT_ref, mcT_ref, mask_ref,
                           wy_ref, wmsum_ref, br_ref,
                           w1_ref, b1_ref, w2_ref, b2_ref,
                           out_ref):
    yT = yT_ref[...]            # (DY, R) f32   y, channels on sublanes
    mcT = mcT_ref[...]          # (1,  R) f32   mask
    masks = mask_ref[...]       # (K*K, 1, R) f32  per-tap validity masks

    # --- resizer (Linear on channel dim) with mask-mul + concat folded in ----
    #   z1 = mc * (y @ W[:dy] + W[dy:].sum(0)) + b        (all transposed: channels x positions)
    g = jnp.dot(wy_ref[...], yT, preferred_element_type=jnp.float32)   # (H, R)
    z1 = mcT * (g + wmsum_ref[...]) + br_ref[...]                      # (H, R) f32

    # --- 3x3 'same' conv as ONE bf16 MXU matmul per layer (im2col via lane rolls) ---
    def conv3x3(a_f32, w_ref_, b_ref_):
        cols = []
        for t, (di, dj) in enumerate(TAPS):
            s = di * N2 + dj                         # row shift in flattened (b,i,j)
            shifted = a_f32 if s == 0 else pltpu.roll(a_f32, (-s) % R, axis=1)
            cols.append((shifted * masks[t]).astype(jnp.bfloat16))     # (H, R) bf16
        slab = jnp.concatenate(cols, axis=0)                           # (K*K*H, R) bf16
        out = jnp.dot(w_ref_[...], slab, preferred_element_type=jnp.float32)
        return out + b_ref_[...]                                       # (H, R) f32

    h1 = jnp.maximum(conv3x3(z1, w1_ref, b1_ref), 0.0)                 # (H, R)
    out_ref[...] = conv3x3(h1, w2_ref, b2_ref)                         # (H, R) f32


# ------------------------------- wrapper -------------------------------------
def gridded_convcnp_encoder(mc, y, params):
    """Matches GriddedConvCNPEncoder.forward(mc, y) -> z_grid of shape (B, N1, N2, H)."""
    wr, br, w1, b1, w2, b2 = params

    # Layout prep: channels -> sublanes, flattened (b, i, j) -> lanes.
    yT = y.reshape(R, DY).T                               # (DY, R)
    mcT = mc.reshape(1, R).astype(jnp.float32)            # (1, R)

    # Resizer weight split (exact algebraic refactor of Linear([y*mc, mc_])).
    wy_t = wr[:DY].T                                      # (H, DY)
    wmsum = jnp.sum(wr[DY:], axis=0)[:, None]             # (H, 1)
    br_c = br[:, None]                                    # (H, 1)

    # Conv weights -> (H_out, K*K*H_in) matching the im2col slab layout, bf16 for the MXU.
    def conv_mat(w):
        return (jnp.transpose(w.reshape(K * K, H, H), (2, 0, 1))
                .reshape(H, K * K * H).astype(jnp.bfloat16))
    w1m, w2m = conv_mat(w1), conv_mat(w2)
    b1_c, b2_c = b1[:, None], b2[:, None]

    # Per-tap validity masks over the flattened lanes (static; also block batch leakage).
    r = np.arange(R)
    i_idx = (r // N2) % N1
    j_idx = r % N2
    mask_np = np.stack([
        ((i_idx + di >= 0) & (i_idx + di < N1) & (j_idx + dj >= 0) & (j_idx + dj < N2))
        for (di, dj) in TAPS]).astype(np.float32).reshape(K * K, 1, R)
    tap_mask = jnp.asarray(mask_np)

    zT = pl.pallas_call(
        gridded_convcnp_kernel,
        out_shape=jax.ShapeDtypeStruct((H, R), jnp.float32),
        grid=(1,),                                         # single step: batch folded into lanes
        in_specs=[
            pl.BlockSpec((DY, R), lambda i: (0, 0)),           # y^T
            pl.BlockSpec((1, R), lambda i: (0, 0)),            # mc^T
            pl.BlockSpec((K * K, 1, R), lambda i: (0, 0, 0)),  # tap masks
            pl.BlockSpec((H, DY), lambda i: (0, 0)),           # resizer W[:dy]^T
            pl.BlockSpec((H, 1), lambda i: (0, 0)),            # resizer W[dy:].sum(0)
            pl.BlockSpec((H, 1), lambda i: (0, 0)),            # resizer bias
            pl.BlockSpec((H, K * K * H), lambda i: (0, 0)),    # conv1 W (im2col layout, bf16)
            pl.BlockSpec((H, 1), lambda i: (0, 0)),            # conv1 b
            pl.BlockSpec((H, K * K * H), lambda i: (0, 0)),    # conv2 W (bf16)
            pl.BlockSpec((H, 1), lambda i: (0, 0)),            # conv2 b
        ],
        out_specs=pl.BlockSpec((H, R), lambda i: (0, 0)),      # lane-dense (512-wide) output
        compiler_params=pltpu.CompilerParams(
            dimension_semantics=("arbitrary",)),
    )(yT, mcT, tap_mask, wy_t, wmsum, br_c, w1m, b1_c, w2m, b2_c)

    return zT.T.reshape(B, N1, N2, H)


# -------------------------- pure-JAX reference -------------------------------
def reference(mc, y, params):
    wr, br, w1, b1, w2, b2 = params
    mc_ = jnp.repeat(mc[..., None], DY, axis=-1)          # (B, N1, N2, DY)
    yc = y * mc_
    z = jnp.concatenate([yc, mc_], axis=-1)               # (B, N1, N2, 2*DY)
    z = jnp.einsum("bijc,ch->bijh", z, wr) + br           # resizer

    def conv(x, w, b):
        xp = jnp.pad(x, ((0, 0), (PAD, PAD), (PAD, PAD), (0, 0)))
        out = jnp.zeros(x.shape[:-1] + (w.shape[-1],), jnp.float32) + b
        for ki in range(K):
            for kj in range(K):
                out = out + jnp.einsum("bijc,co->bijo",
                                       xp[:, ki:ki + N1, kj:kj + N2, :], w[ki, kj])
        return out

    h = jnp.maximum(conv(z, w1, b1), 0.0)
    return conv(h, w2, b2)


# --------------------------------- main --------------------------------------
if __name__ == "__main__":
    key = jax.random.PRNGKey(0)
    k_mc, k_y, k_wr, k_w1, k_w2 = jax.random.split(key, 5)

    # Inputs: gridded mask + gridded observations.
    mc = jax.random.bernoulli(k_mc, 0.5, (B, N1, N2)).astype(jnp.float32)
    y = jax.random.normal(k_y, (B, N1, N2, DY), jnp.float32)

    # Deterministic synthetic parameters (not a checkpoint).
    wr = 0.3 * jax.random.normal(k_wr, (C_IN, H), jnp.float32)
    br = jnp.zeros((H,), jnp.float32)
    w1 = 0.1 * jax.random.normal(k_w1, (K, K, H, H), jnp.float32)
    b1 = 0.01 * jnp.ones((H,), jnp.float32)
    w2 = 0.1 * jax.random.normal(k_w2, (K, K, H, H), jnp.float32)
    b2 = 0.01 * jnp.ones((H,), jnp.float32)
    params = (wr, br, w1, b1, w2, b2)

    z_grid = gridded_convcnp_encoder(mc, y, params)
    jax.block_until_ready(z_grid)

    z_ref = reference(mc, y, params)
    assert z_grid.shape == (B, N1, N2, H)
    assert jnp.allclose(z_grid, z_ref, atol=3e-2, rtol=3e-2), (
        "z_grid mismatch, max abs err = %f" % float(jnp.max(jnp.abs(z_grid - z_ref))))

    print("KERNEL_OK")
</pallas_src>

<mosaic_0001>
module attributes {stable_mosaic.version = 11 : i64} {
  func.func @gridded_convcnp_kernel(%arg0: i32, %arg1: memref<2x512xf32, #tpu.memory_space<vmem>>, %arg2: memref<1x512xf32, #tpu.memory_space<vmem>>, %arg3: memref<9x1x512xf32, #tpu.memory_space<vmem>>, %arg4: memref<32x2xf32, #tpu.memory_space<vmem>>, %arg5: memref<32x1xf32, #tpu.memory_space<vmem>>, %arg6: memref<32x1xf32, #tpu.memory_space<vmem>>, %arg7: memref<32x288xbf16, #tpu.memory_space<vmem>>, %arg8: memref<32x1xf32, #tpu.memory_space<vmem>>, %arg9: memref<32x288xbf16, #tpu.memory_space<vmem>>, %arg10: memref<32x1xf32, #tpu.memory_space<vmem>>, %arg11: memref<32x512xf32, #tpu.memory_space<vmem>>) attributes {dimension_semantics = [#tpu.dimension_semantics<arbitrary>], iteration_bounds = array<i64: 1>, scalar_prefetch = 0 : i64, scratch_operands = 0 : i64, tpu.core_type = #tpu.core_type<tc>, window_params = [{pipeline_mode = #tpu.pipeline_mode<synchronous>, transform_indices = @transform_0, window_bounds = array<i64: 2, 512>}, {pipeline_mode = #tpu.pipeline_mode<synchronous>, transform_indices = @transform_1, window_bounds = array<i64: 1, 512>}, {pipeline_mode = #tpu.pipeline_mode<synchronous>, transform_indices = @transform_2, window_bounds = array<i64: 9, 1, 512>}, {pipeline_mode = #tpu.pipeline_mode<synchronous>, transform_indices = @transform_3, window_bounds = array<i64: 32, 2>}, {pipeline_mode = #tpu.pipeline_mode<synchronous>, transform_indices = @transform_4, window_bounds = array<i64: 32, 1>}, {pipeline_mode = #tpu.pipeline_mode<synchronous>, transform_indices = @transform_5, window_bounds = array<i64: 32, 1>}, {pipeline_mode = #tpu.pipeline_mode<synchronous>, transform_indices = @transform_6, window_bounds = array<i64: 32, 288>}, {pipeline_mode = #tpu.pipeline_mode<synchronous>, transform_indices = @transform_7, window_bounds = array<i64: 32, 1>}, {pipeline_mode = #tpu.pipeline_mode<synchronous>, transform_indices = @transform_8, window_bounds = array<i64: 32, 288>}, {pipeline_mode = #tpu.pipeline_mode<synchronous>, transform_indices = @transform_9, window_bounds = array<i64: 32, 1>}, {pipeline_mode = #tpu.pipeline_mode<synchronous>, transform_indices = @transform_10, window_bounds = array<i64: 32, 512>}]} {
    %c0 = arith.constant 0 : index
    %c0_0 = arith.constant 0 : index
    %0 = vector.load %arg1[%c0, %c0_0] : memref<2x512xf32, #tpu.memory_space<vmem>>, vector<2x512xf32>
    %c0_1 = arith.constant 0 : index
    %c0_2 = arith.constant 0 : index
    %1 = vector.load %arg2[%c0_1, %c0_2] : memref<1x512xf32, #tpu.memory_space<vmem>>, vector<1x512xf32>
    %c0_3 = arith.constant 0 : index
    %c0_4 = arith.constant 0 : index
    %c0_5 = arith.constant 0 : index
    %2 = vector.load %arg3[%c0_3, %c0_4, %c0_5] : memref<9x1x512xf32, #tpu.memory_space<vmem>>, vector<9x1x512xf32>
    %c0_6 = arith.constant 0 : index
    %c0_7 = arith.constant 0 : index
    %3 = vector.load %arg4[%c0_6, %c0_7] : memref<32x2xf32, #tpu.memory_space<vmem>>, vector<32x2xf32>
    %cst = arith.constant dense<0.000000e+00> : vector<32x512xf32>
    %4 = tpu.matmul %3, %0, %cst {dimension_numbers = #tpu.dot_dimension_numbers<[1], [0], [0], [1], [0, 0, 1, 1], [], []>} : vector<32x2xf32>, vector<2x512xf32>, vector<32x512xf32> -> vector<32x512xf32>
    %c0_8 = arith.constant 0 : index
    %c0_9 = arith.constant 0 : index
    %5 = vector.load %arg5[%c0_8, %c0_9] : memref<32x1xf32, #tpu.memory_space<vmem>>, vector<32x1xf32>
    %6 = vector.broadcast %5 : vector<32x1xf32> to vector<32x512xf32>
    %7 = arith.addf %4, %6 : vector<32x512xf32>
    %8 = vector.broadcast %1 : vector<1x512xf32> to vector<32x512xf32>
    %9 = arith.mulf %8, %7 : vector<32x512xf32>
    %c0_10 = arith.constant 0 : index
    %c0_11 = arith.constant 0 : index
    %10 = vector.load %arg6[%c0_10, %c0_11] : memref<32x1xf32, #tpu.memory_space<vmem>>, vector<32x1xf32>
    %11 = vector.broadcast %10 : vector<32x1xf32> to vector<32x512xf32>
    %12 = arith.addf %9, %11 : vector<32x512xf32>
    %c17_i32 = arith.constant 17 : i32
    %13 = tpu.dynamic_rotate %12 by %c17_i32 dim 1 : vector<32x512xf32>, i32 -> vector<32x512xf32>
    %14 = vector.extract_strided_slice %2 {offsets = [0, 0, 0], sizes = [1, 1, 512], strides = [1, 1, 1]} : vector<9x1x512xf32> to vector<1x1x512xf32>
    %15 = vector.shape_cast %14 : vector<1x1x512xf32> to vector<1x512xf32>
    %16 = vector.broadcast %15 : vector<1x512xf32> to vector<32x512xf32>
    %17 = arith.mulf %13, %16 : vector<32x512xf32>
    %18 = arith.truncf %17 : vector<32x512xf32> to vector<32x512xbf16>
    %c16_i32 = arith.constant 16 : i32
    %19 = tpu.dynamic_rotate %12 by %c16_i32 dim 1 : vector<32x512xf32>, i32 -> vector<32x512xf32>
    %20 = vector.extract_strided_slice %2 {offsets = [1, 0, 0], sizes = [1, 1, 512], strides = [1, 1, 1]} : vector<9x1x512xf32> to vector<1x1x512xf32>
    %21 = vector.shape_cast %20 : vector<1x1x512xf32> to vector<1x512xf32>
    %22 = vector.broadcast %21 : vector<1x512xf32> to vector<32x512xf32>
    %23 = arith.mulf %19, %22 : vector<32x512xf32>
    %24 = arith.truncf %23 : vector<32x512xf32> to vector<32x512xbf16>
    %c15_i32 = arith.constant 15 : i32
    %25 = tpu.dynamic_rotate %12 by %c15_i32 dim 1 : vector<32x512xf32>, i32 -> vector<32x512xf32>
    %26 = vector.extract_strided_slice %2 {offsets = [2, 0, 0], sizes = [1, 1, 512], strides = [1, 1, 1]} : vector<9x1x512xf32> to vector<1x1x512xf32>
    %27 = vector.shape_cast %26 : vector<1x1x512xf32> to vector<1x512xf32>
    %28 = vector.broadcast %27 : vector<1x512xf32> to vector<32x512xf32>
    %29 = arith.mulf %25, %28 : vector<32x512xf32>
    %30 = arith.truncf %29 : vector<32x512xf32> to vector<32x512xbf16>
    %c1_i32 = arith.constant 1 : i32
    %31 = tpu.dynamic_rotate %12 by %c1_i32 dim 1 : vector<32x512xf32>, i32 -> vector<32x512xf32>
    %32 = vector.extract_strided_slice %2 {offsets = [3, 0, 0], sizes = [1, 1, 512], strides = [1, 1, 1]} : vector<9x1x512xf32> to vector<1x1x512xf32>
    %33 = vector.shape_cast %32 : vector<1x1x512xf32> to vector<1x512xf32>
    %34 = vector.broadcast %33 : vector<1x512xf32> to vector<32x512xf32>
    %35 = arith.mulf %31, %34 : vector<32x512xf32>
    %36 = arith.truncf %35 : vector<32x512xf32> to vector<32x512xbf16>
    %37 = vector.extract_strided_slice %2 {offsets = [4, 0, 0], sizes = [1, 1, 512], strides = [1, 1, 1]} : vector<9x1x512xf32> to vector<1x1x512xf32>
    %38 = vector.shape_cast %37 : vector<1x1x512xf32> to vector<1x512xf32>
    %39 = vector.broadcast %38 : vector<1x512xf32> to vector<32x512xf32>
    %40 = arith.mulf %12, %39 : vector<32x512xf32>
    %41 = arith.truncf %40 : vector<32x512xf32> to vector<32x512xbf16>
    %c511_i32 = arith.constant 511 : i32
    %42 = tpu.dynamic_rotate %12 by %c511_i32 dim 1 : vector<32x512xf32>, i32 -> vector<32x512xf32>
    %43 = vector.extract_strided_slice %2 {offsets = [5, 0, 0], sizes = [1, 1, 512], strides = [1, 1, 1]} : vector<9x1x512xf32> to vector<1x1x512xf32>
    %44 = vector.shape_cast %43 : vector<1x1x512xf32> to vector<1x512xf32>
    %45 = vector.broadcast %44 : vector<1x512xf32> to vector<32x512xf32>
    %46 = arith.mulf %42, %45 : vector<32x512xf32>
    %47 = arith.truncf %46 : vector<32x512xf32> to vector<32x512xbf16>
    %c497_i32 = arith.constant 497 : i32
    %48 = tpu.dynamic_rotate %12 by %c497_i32 dim 1 : vector<32x512xf32>, i32 -> vector<32x512xf32>
    %49 = vector.extract_strided_slice %2 {offsets = [6, 0, 0], sizes = [1, 1, 512], strides = [1, 1, 1]} : vector<9x1x512xf32> to vector<1x1x512xf32>
    %50 = vector.shape_cast %49 : vector<1x1x512xf32> to vector<1x512xf32>
    %51 = vector.broadcast %50 : vector<1x512xf32> to vector<32x512xf32>
    %52 = arith.mulf %48, %51 : vector<32x512xf32>
    %53 = arith.truncf %52 : vector<32x512xf32> to vector<32x512xbf16>
    %c496_i32 = arith.constant 496 : i32
    %54 = tpu.dynamic_rotate %12 by %c496_i32 dim 1 : vector<32x512xf32>, i32 -> vector<32x512xf32>
    %55 = vector.extract_strided_slice %2 {offsets = [7, 0, 0], sizes = [1, 1, 512], strides = [1, 1, 1]} : vector<9x1x512xf32> to vector<1x1x512xf32>
    %56 = vector.shape_cast %55 : vector<1x1x512xf32> to vector<1x512xf32>
    %57 = vector.broadcast %56 : vector<1x512xf32> to vector<32x512xf32>
    %58 = arith.mulf %54, %57 : vector<32x512xf32>
    %59 = arith.truncf %58 : vector<32x512xf32> to vector<32x512xbf16>
    %c495_i32 = arith.constant 495 : i32
    %60 = tpu.dynamic_rotate %12 by %c495_i32 dim 1 : vector<32x512xf32>, i32 -> vector<32x512xf32>
    %61 = vector.extract_strided_slice %2 {offsets = [8, 0, 0], sizes = [1, 1, 512], strides = [1, 1, 1]} : vector<9x1x512xf32> to vector<1x1x512xf32>
    %62 = vector.shape_cast %61 : vector<1x1x512xf32> to vector<1x512xf32>
    %63 = vector.broadcast %62 : vector<1x512xf32> to vector<32x512xf32>
    %64 = arith.mulf %60, %63 : vector<32x512xf32>
    %65 = arith.truncf %64 : vector<32x512xf32> to vector<32x512xbf16>
    %66 = tpu.concatenate %18, %24, %30, %36, %41, %47, %53, %59, %65 in 0 : vector<32x512xbf16>, vector<32x512xbf16>, vector<32x512xbf16>, vector<32x512xbf16>, vector<32x512xbf16>, vector<32x512xbf16>, vector<32x512xbf16>, vector<32x512xbf16>, vector<32x512xbf16> -> vector<288x512xbf16>
    %c0_12 = arith.constant 0 : index
    %c0_13 = arith.constant 0 : index
    %67 = vector.load %arg7[%c0_12, %c0_13] : memref<32x288xbf16, #tpu.memory_space<vmem>>, vector<32x288xbf16>
    %cst_14 = arith.constant dense<0.000000e+00> : vector<32x512xf32>
    %68 = tpu.matmul %67, %66, %cst_14 {dimension_numbers = #tpu.dot_dimension_numbers<[1], [0], [0], [1], [0, 0, 1, 1], [], []>} : vector<32x288xbf16>, vector<288x512xbf16>, vector<32x512xf32> -> vector<32x512xf32>
    %c0_15 = arith.constant 0 : index
    %c0_16 = arith.constant 0 : index
    %69 = vector.load %arg8[%c0_15, %c0_16] : memref<32x1xf32, #tpu.memory_space<vmem>>, vector<32x1xf32>
    %70 = vector.broadcast %69 : vector<32x1xf32> to vector<32x512xf32>
    %71 = arith.addf %68, %70 : vector<32x512xf32>
    %cst_17 = arith.constant 0.000000e+00 : f32
    %72 = vector.broadcast %cst_17 : f32 to vector<32x512xf32>
    %73 = arith.maximumf %71, %72 : vector<32x512xf32>
    %c17_i32_18 = arith.constant 17 : i32
    %74 = tpu.dynamic_rotate %73 by %c17_i32_18 dim 1 : vector<32x512xf32>, i32 -> vector<32x512xf32>
    %75 = vector.extract_strided_slice %2 {offsets = [0, 0, 0], sizes = [1, 1, 512], strides = [1, 1, 1]} : vector<9x1x512xf32> to vector<1x1x512xf32>
    %76 = vector.shape_cast %75 : vector<1x1x512xf32> to vector<1x512xf32>
    %77 = vector.broadcast %76 : vector<1x512xf32> to vector<32x512xf32>
    %78 = arith.mulf %74, %77 : vector<32x512xf32>
    %79 = arith.truncf %78 : vector<32x512xf32> to vector<32x512xbf16>
    %c16_i32_19 = arith.constant 16 : i32
    %80 = tpu.dynamic_rotate %73 by %c16_i32_19 dim 1 : vector<32x512xf32>, i32 -> vector<32x512xf32>
    %81 = vector.extract_strided_slice %2 {offsets = [1, 0, 0], sizes = [1, 1, 512], strides = [1, 1, 1]} : vector<9x1x512xf32> to vector<1x1x512xf32>
    %82 = vector.shape_cast %81 : vector<1x1x512xf32> to vector<1x512xf32>
    %83 = vector.broadcast %82 : vector<1x512xf32> to vector<32x512xf32>
    %84 = arith.mulf %80, %83 : vector<32x512xf32>
    %85 = arith.truncf %84 : vector<32x512xf32> to vector<32x512xbf16>
    %c15_i32_20 = arith.constant 15 : i32
    %86 = tpu.dynamic_rotate %73 by %c15_i32_20 dim 1 : vector<32x512xf32>, i32 -> vector<32x512xf32>
    %87 = vector.extract_strided_slice %2 {offsets = [2, 0, 0], sizes = [1, 1, 512], strides = [1, 1, 1]} : vector<9x1x512xf32> to vector<1x1x512xf32>
    %88 = vector.shape_cast %87 : vector<1x1x512xf32> to vector<1x512xf32>
    %89 = vector.broadcast %88 : vector<1x512xf32> to vector<32x512xf32>
    %90 = arith.mulf %86, %89 : vector<32x512xf32>
    %91 = arith.truncf %90 : vector<32x512xf32> to vector<32x512xbf16>
    %c1_i32_21 = arith.constant 1 : i32
    %92 = tpu.dynamic_rotate %73 by %c1_i32_21 dim 1 : vector<32x512xf32>, i32 -> vector<32x512xf32>
    %93 = vector.extract_strided_slice %2 {offsets = [3, 0, 0], sizes = [1, 1, 512], strides = [1, 1, 1]} : vector<9x1x512xf32> to vector<1x1x512xf32>
    %94 = vector.shape_cast %93 : vector<1x1x512xf32> to vector<1x512xf32>
    %95 = vector.broadcast %94 : vector<1x512xf32> to vector<32x512xf32>
    %96 = arith.mulf %92, %95 : vector<32x512xf32>
    %97 = arith.truncf %96 : vector<32x512xf32> to vector<32x512xbf16>
    %98 = vector.extract_strided_slice %2 {offsets = [4, 0, 0], sizes = [1, 1, 512], strides = [1, 1, 1]} : vector<9x1x512xf32> to vector<1x1x512xf32>
    %99 = vector.shape_cast %98 : vector<1x1x512xf32> to vector<1x512xf32>
    %100 = vector.broadcast %99 : vector<1x512xf32> to vector<32x512xf32>
    %101 = arith.mulf %73, %100 : vector<32x512xf32>
    %102 = arith.truncf %101 : vector<32x512xf32> to vector<32x512xbf16>
    %c511_i32_22 = arith.constant 511 : i32
    %103 = tpu.dynamic_rotate %73 by %c511_i32_22 dim 1 : vector<32x512xf32>, i32 -> vector<32x512xf32>
    %104 = vector.extract_strided_slice %2 {offsets = [5, 0, 0], sizes = [1, 1, 512], strides = [1, 1, 1]} : vector<9x1x512xf32> to vector<1x1x512xf32>
    %105 = vector.shape_cast %104 : vector<1x1x512xf32> to vector<1x512xf32>
    %106 = vector.broadcast %105 : vector<1x512xf32> to vector<32x512xf32>
    %107 = arith.mulf %103, %106 : vector<32x512xf32>
    %108 = arith.truncf %107 : vector<32x512xf32> to vector<32x512xbf16>
    %c497_i32_23 = arith.constant 497 : i32
    %109 = tpu.dynamic_rotate %73 by %c497_i32_23 dim 1 : vector<32x512xf32>, i32 -> vector<32x512xf32>
    %110 = vector.extract_strided_slice %2 {offsets = [6, 0, 0], sizes = [1, 1, 512], strides = [1, 1, 1]} : vector<9x1x512xf32> to vector<1x1x512xf32>
    %111 = vector.shape_cast %110 : vector<1x1x512xf32> to vector<1x512xf32>
    %112 = vector.broadcast %111 : vector<1x512xf32> to vector<32x512xf32>
    %113 = arith.mulf %109, %112 : vector<32x512xf32>
    %114 = arith.truncf %113 : vector<32x512xf32> to vector<32x512xbf16>
    %c496_i32_24 = arith.constant 496 : i32
    %115 = tpu.dynamic_rotate %73 by %c496_i32_24 dim 1 : vector<32x512xf32>, i32 -> vector<32x512xf32>
    %116 = vector.extract_strided_slice %2 {offsets = [7, 0, 0], sizes = [1, 1, 512], strides = [1, 1, 1]} : vector<9x1x512xf32> to vector<1x1x512xf32>
    %117 = vector.shape_cast %116 : vector<1x1x512xf32> to vector<1x512xf32>
    %118 = vector.broadcast %117 : vector<1x512xf32> to vector<32x512xf32>
    %119 = arith.mulf %115, %118 : vector<32x512xf32>
    %120 = arith.truncf %119 : vector<32x512xf32> to vector<32x512xbf16>
    %c495_i32_25 = arith.constant 495 : i32
    %121 = tpu.dynamic_rotate %73 by %c495_i32_25 dim 1 : vector<32x512xf32>, i32 -> vector<32x512xf32>
    %122 = vector.extract_strided_slice %2 {offsets = [8, 0, 0], sizes = [1, 1, 512], strides = [1, 1, 1]} : vector<9x1x512xf32> to vector<1x1x512xf32>
    %123 = vector.shape_cast %122 : vector<1x1x512xf32> to vector<1x512xf32>
    %124 = vector.broadcast %123 : vector<1x512xf32> to vector<32x512xf32>
    %125 = arith.mulf %121, %124 : vector<32x512xf32>
    %126 = arith.truncf %125 : vector<32x512xf32> to vector<32x512xbf16>
    %127 = tpu.concatenate %79, %85, %91, %97, %102, %108, %114, %120, %126 in 0 : vector<32x512xbf16>, vector<32x512xbf16>, vector<32x512xbf16>, vector<32x512xbf16>, vector<32x512xbf16>, vector<32x512xbf16>, vector<32x512xbf16>, vector<32x512xbf16>, vector<32x512xbf16> -> vector<288x512xbf16>
    %c0_26 = arith.constant 0 : index
    %c0_27 = arith.constant 0 : index
    %128 = vector.load %arg9[%c0_26, %c0_27] : memref<32x288xbf16, #tpu.memory_space<vmem>>, vector<32x288xbf16>
    %cst_28 = arith.constant dense<0.000000e+00> : vector<32x512xf32>
    %129 = tpu.matmul %128, %127, %cst_28 {dimension_numbers = #tpu.dot_dimension_numbers<[1], [0], [0], [1], [0, 0, 1, 1], [], []>} : vector<32x288xbf16>, vector<288x512xbf16>, vector<32x512xf32> -> vector<32x512xf32>
    %c0_29 = arith.constant 0 : index
    %c0_30 = arith.constant 0 : index
    %130 = vector.load %arg10[%c0_29, %c0_30] : memref<32x1xf32, #tpu.memory_space<vmem>>, vector<32x1xf32>
    %131 = vector.broadcast %130 : vector<32x1xf32> to vector<32x512xf32>
    %132 = arith.addf %129, %131 : vector<32x512xf32>
    %c0_31 = arith.constant 0 : index
    %c0_32 = arith.constant 0 : index
    %133 = vector.load %arg11[%c0_31, %c0_32] : memref<32x512xf32, #tpu.memory_space<vmem>>, vector<32x512xf32>
    tpu.vector_store %arg11[%c0_31, %c0_32], %132 {strides = array<i32>} : memref<32x512xf32, #tpu.memory_space<vmem>>, vector<32x512xf32>,
    return
  }
  func.func @transform_0(%arg0: i32) -> (i32, i32) {
    %c0_i32 = arith.constant 0 : i32
    %c0_i32_0 = arith.constant 0 : i32
    %c0_i32_1 = arith.constant 0 : i32
    return %c0_i32, %c0_i32_0 : i32, i32
  }
  func.func @transform_1(%arg0: i32) -> (i32, i32) {
    %c0_i32 = arith.constant 0 : i32
    %c0_i32_0 = arith.constant 0 : i32
    %c0_i32_1 = arith.constant 0 : i32
    return %c0_i32, %c0_i32_0 : i32, i32
  }
  func.func @transform_2(%arg0: i32) -> (i32, i32, i32) {
    %c0_i32 = arith.constant 0 : i32
    %c0_i32_0 = arith.constant 0 : i32
    %c0_i32_1 = arith.constant 0 : i32
    %c0_i32_2 = arith.constant 0 : i32
    return %c0_i32, %c0_i32_0, %c0_i32_1 : i32, i32, i32
  }
  func.func @transform_3(%arg0: i32) -> (i32, i32) {
    %c0_i32 = arith.constant 0 : i32
    %c0_i32_0 = arith.constant 0 : i32
    %c0_i32_1 = arith.constant 0 : i32
    return %c0_i32, %c0_i32_0 : i32, i32
  }
  func.func @transform_4(%arg0: i32) -> (i32, i32) {
    %c0_i32 = arith.constant 0 : i32
    %c0_i32_0 = arith.constant 0 : i32
    %c0_i32_1 = arith.constant 0 : i32
    return %c0_i32, %c0_i32_0 : i32, i32
  }
  func.func @transform_5(%arg0: i32) -> (i32, i32) {
    %c0_i32 = arith.constant 0 : i32
    %c0_i32_0 = arith.constant 0 : i32
    %c0_i32_1 = arith.constant 0 : i32
    return %c0_i32, %c0_i32_0 : i32, i32
  }
  func.func @transform_6(%arg0: i32) -> (i32, i32) {
    %c0_i32 = arith.constant 0 : i32
    %c0_i32_0 = arith.constant 0 : i32
    %c0_i32_1 = arith.constant 0 : i32
    return %c0_i32, %c0_i32_0 : i32, i32
  }
  func.func @transform_7(%arg0: i32) -> (i32, i32) {
    %c0_i32 = arith.constant 0 : i32
    %c0_i32_0 = arith.constant 0 : i32
    %c0_i32_1 = arith.constant 0 : i32
    return %c0_i32, %c0_i32_0 : i32, i32
  }
  func.func @transform_8(%arg0: i32) -> (i32, i32) {
    %c0_i32 = arith.constant 0 : i32
    %c0_i32_0 = arith.constant 0 : i32
    %c0_i32_1 = arith.constant 0 : i32
    return %c0_i32, %c0_i32_0 : i32, i32
  }
  func.func @transform_9(%arg0: i32) -> (i32, i32) {
    %c0_i32 = arith.constant 0 : i32
    %c0_i32_0 = arith.constant 0 : i32
    %c0_i32_1 = arith.constant 0 : i32
    return %c0_i32, %c0_i32_0 : i32, i32
  }
  func.func @transform_10(%arg0: i32) -> (i32, i32) {
    %c0_i32 = arith.constant 0 : i32
    %c0_i32_0 = arith.constant 0 : i32
    %c0_i32_1 = arith.constant 0 : i32
    return %c0_i32, %c0_i32_0 : i32, i32
  }
}

</mosaic_0001>

<llo_original>
// kernel: tpu_custom_call.1
$region0: #{tpu_custom_call.1}
  #allocation0 [shape = 'u32[]', space=smem, size = 0x4, offset = 0x4, fixed_abs, tag = 'smem constant byte address 0x4 - core index']
  #allocation1 [shape = 'u32[144,128]{1,0:T(1,128)}', space=vmem, size = 0x12000, scoped, tag = 'internal scratch']
  %s0 = inlined_call_operand.vmem [shape: f32[2,512], index: 0, kind: input, shape index: {}]
  %s1 = inlined_call_operand.vmem [shape: f32[1,512], index: 1, kind: input, shape index: {}]
  %s2 = inlined_call_operand.vmem [shape: f32[9,1,512], index: 2, kind: input, shape index: {}]
  %s3 = inlined_call_operand.vmem [shape: f32[32,2], index: 3, kind: input, shape index: {}]
  %s4 = inlined_call_operand.vmem [shape: f32[32,1], index: 4, kind: input, shape index: {}]
  %s5 = inlined_call_operand.vmem [shape: f32[32,1], index: 5, kind: input, shape index: {}]
  %s6 = inlined_call_operand.vmem [shape: bf16[32,288], index: 6, kind: input, shape index: {}]
  %s7 = inlined_call_operand.vmem [shape: f32[32,1], index: 7, kind: input, shape index: {}]
  %s8 = inlined_call_operand.vmem [shape: bf16[32,288], index: 8, kind: input, shape index: {}]
  %s9 = inlined_call_operand.vmem [shape: f32[32,1], index: 9, kind: input, shape index: {}]
  %s10 = inlined_call_operand.hbm [shape: f32[32,512], index: 10, kind: output, shape index: {}]
  %s11 = sld [smem:[#allocation0]]
  $region50: #{tpu_custom_call.1} parent=0
    _
  %s13 = ssub.s32 1, %s11
  %s14 = scalar_select 0, %s13, %s11
  $region1: #{tpu_custom_call.1} parent=0
    #allocation2 [shape = 'u8[65536]{0}', space=vmem, size = 0x10000, scoped, tag = 'output window, operand 0, single buffered']
    #allocation3 [shape = 's32[1]{0}', space=sflag, size = 0x4, scoped, tag = 'scoped memory for tpu_custom_call.1']
    %15 = vsyncpa [#allocation3], 0
    // Predicated region
    $region2: #{tpu_custom_call.1} parent=1 // pred_check
      _
    $region3: #{tpu_custom_call.1} parent=1 // pred_check_branch
      %17 = sbr.rel (0) target = $region5
    $region4: #{tpu_custom_call.1} parent=1 // pred_region
      _
    $region5: #{tpu_custom_call.1} parent=1 // pred_fallthru
      _
    // Predicated region
    $region6: #{tpu_custom_call.1} parent=1 // pred_check
      _
    $region7: #{tpu_custom_call.1} parent=1 // pred_check_branch
      %19 = sbr.rel (0) target = $region9
    $region8: #{tpu_custom_call.1} parent=1 // pred_region
      _
    $region9: #{tpu_custom_call.1} parent=1 // pred_fallthru
      _
    // Predicated region
    $region10: #{tpu_custom_call.1} parent=1 // pred_check
      _
    $region11: #{tpu_custom_call.1} parent=1 // pred_check_branch
      %21 = sbr.rel (0) target = $region13
    $region12: #{tpu_custom_call.1} parent=1 // pred_region
      _
    $region13: #{tpu_custom_call.1} parent=1 // pred_fallthru
      _
    // Predicated region
    $region14: #{tpu_custom_call.1} parent=1 // pred_check
      _
    $region15: #{tpu_custom_call.1} parent=1 // pred_check_branch
      %23 = sbr.rel (0) target = $region17
    $region16: #{tpu_custom_call.1} parent=1 // pred_region
      _
    $region17: #{tpu_custom_call.1} parent=1 // pred_fallthru
      _
    // Predicated region
    $region18: #{tpu_custom_call.1} parent=1 // pred_check
      _
    $region19: #{tpu_custom_call.1} parent=1 // pred_check_branch
      %25 = sbr.rel (0) target = $region21
    $region20: #{tpu_custom_call.1} parent=1 // pred_region
      _
    $region21: #{tpu_custom_call.1} parent=1 // pred_fallthru
      _
    // Predicated region
    $region22: #{tpu_custom_call.1} parent=1 // pred_check
      _
    $region23: #{tpu_custom_call.1} parent=1 // pred_check_branch
      %27 = sbr.rel (0) target = $region25
    $region24: #{tpu_custom_call.1} parent=1 // pred_region
      _
    $region25: #{tpu_custom_call.1} parent=1 // pred_fallthru
      _
    // Predicated region
    $region26: #{tpu_custom_call.1} parent=1 // pred_check
      _
    $region27: #{tpu_custom_call.1} parent=1 // pred_check_branch
      %29 = sbr.rel (0) target = $region29
    $region28: #{tpu_custom_call.1} parent=1 // pred_region
      _
    $region29: #{tpu_custom_call.1} parent=1 // pred_fallthru
      _
    // Predicated region
    $region30: #{tpu_custom_call.1} parent=1 // pred_check
      _
    $region31: #{tpu_custom_call.1} parent=1 // pred_check_branch
      %31 = sbr.rel (0) target = $region33
    $region32: #{tpu_custom_call.1} parent=1 // pred_region
      _
    $region33: #{tpu_custom_call.1} parent=1 // pred_fallthru
      _
    // Predicated region
    $region34: #{tpu_custom_call.1} parent=1 // pred_check
      _
    $region35: #{tpu_custom_call.1} parent=1 // pred_check_branch
      %33 = sbr.rel (0) target = $region37
    $region36: #{tpu_custom_call.1} parent=1 // pred_region
      _
    $region37: #{tpu_custom_call.1} parent=1 // pred_fallthru
      _
    // Predicated region
    $region38: #{tpu_custom_call.1} parent=1 // pred_check
      _
    $region39: #{tpu_custom_call.1} parent=1 // pred_check_branch
      %35 = sbr.rel (0) target = $region41
    $region40: #{tpu_custom_call.1} parent=1 // pred_region
      _
    $region41: #{tpu_custom_call.1} parent=1 // pred_fallthru
      _
    %v37 = vld [vmem:[%s0] sm:$0xff]
    %v38 = vld [vmem:[%s1] sm:$0xf]
    %v39 = vld [vmem:[%s2] sm:$0xf]
    %v40 = vld [vmem:[%s2 + $0x4] sm:$0xf]
    %v41 = vld [vmem:[%s2 + $0x8] sm:$0xf]
    %v42 = vld [vmem:[%s2 + $0xc] sm:$0xf]
    %v43 = vld [vmem:[%s2 + $0x10] sm:$0xf]
    %v44 = vld [vmem:[%s2 + $0x14] sm:$0xf]
    %v45 = vld [vmem:[%s2 + $0x18] sm:$0xf]
    %v46 = vld [vmem:[%s2 + $0x1c] sm:$0xf]
    %v47 = vld [vmem:[%s2 + $0x20] sm:$0xf]
    %v48 = vld [vmem:[%s3] sm:$0xff]
    %v49 = vld [vmem:[%s3 + $0x8] sm:$0xff]
    %v50 = vld [vmem:[%s3 + $0x10] sm:$0xff]
    %v51 = vld [vmem:[%s3 + $0x18] sm:$0xff]
    %v52 = vld [vmem:[%s4] sm:$0xff]
    %v53 = vld [vmem:[%s4 + $0x8] sm:$0xff]
    %v54 = vld [vmem:[%s4 + $0x10] sm:$0xff]
    %v55 = vld [vmem:[%s4 + $0x18] sm:$0xff]
    %57 = vset.pattern.permute.xlu0 0
    %58 = vperm.xlu0 %57, %v52
    %v59 = vpop.permute.xlu0 %58
    %62 = vset.pattern.permute.xlu0 0
    %63 = vperm.xlu0 %62, %v53
    %v64 = vpop.permute.xlu0 %63
    %67 = vset.pattern.permute.xlu0 0
    %68 = vperm.xlu0 %67, %v54
    %v69 = vpop.permute.xlu0 %68
    %72 = vset.pattern.permute.xlu0 0
    %73 = vperm.xlu0 %72, %v55
    %v74 = vpop.permute.xlu0 %73
    %v77 = vcombine.high %v37, %v37
    %v79 = vunpack.c.l.s4 1983009808
    %v80 = vunpack.c.0.s8 %v79
    %v81 = vlaneseq
    %v82 = vshrl.u32 %v81, 7
    %v83 = vsub.s32 %v80, %v82
    %v84 = vrot.slane %v37, %v83
    %v86 = vunpack.c.l.s4 1983009808
    %v87 = vunpack.c.0.s8 %v86
    %v88 = vlaneseq
    %v89 = vshrl.u32 %v88, 7
    %v90 = vsub.s32 %v87, %v89
    %v91 = vrot.slane %v77, %v90
    %v92 = vcombine.high %v84, %v84
    %v93 = vcombine.high %v91, %v91
    %vm94 = vcmask 15360
    %v96 = vsel %vm94, %v48, 0
    %v99 = vsel %vm94, %v49, 0
    %v102 = vsel %vm94, %v50, 0
    %v105 = vsel %vm94, %v51, 0
    %vm107 = vcmask 1041408
    %v108 = vsel %vm107, %v84, 0
    %v110 = vsel %vm107, %v92, 0
    %v112 = vsel %vm107, %v91, 0
    %v114 = vsel %vm107, %v93, 0
    %116 = vmatprep.subr.mxu0 %v110
    %117 = vmatpush1.msra.mxu0 %v108
    %118 = vmatprep.subr.mxu0 0.0
    %119 = vmatpush1.msra.mxu0 0.0
    %120 = vmatprep.subr.mxu0 0.0
    %121 = vmatpush1.msra.mxu0 0.0
    %122 = vmatprep.subr.mxu0 0.0
    %123 = vmatpush1.msra.mxu0 0.0
    %124 = vmatprep.subr.mxu0 0.0
    %125 = vmatpush1.msra.mxu0 0.0
    %126 = vmatprep.subr.mxu0 0.0
    %127 = vmatpush1.msra.mxu0 0.0
    %128 = vmatprep.subr.mxu0 0.0
    %129 = vmatpush1.msra.mxu0 0.0
    %130 = vmatprep.subr.mxu0 0.0
    %131 = vmatpush1.msra.mxu0 0.0
    %132 = vmatprep.subr.mxu0 0.0
    %133 = vmatpush1.msra.mxu0 0.0
    %134 = vmatprep.subr.mxu0 0.0
    %135 = vmatpush1.msra.mxu0 0.0
    %136 = vmatprep.subr.mxu0 0.0
    %137 = vmatpush1.msra.mxu0 0.0
    %138 = vmatprep.subr.mxu0 0.0
    %139 = vmatpush1.msra.mxu0 0.0
    %140 = vmatprep.subr.mxu0 0.0
    %141 = vmatpush1.msra.mxu0 0.0
    %142 = vmatprep.subr.mxu0 0.0
    %143 = vmatpush1.msra.mxu0 0.0
    %144 = vmatprep.subr.mxu0 0.0
    %145 = vmatpush1.msra.mxu0 0.0
    %146 = vmatprep.subr.mxu0 0.0
    %147 = vmatpush1.msra.mxu0 0.0
    %148 = vmatprep.subr.mxu0 0.0
    %149 = vmatpush1.msra.mxu0 0.0
    %150 = vmatprep.subr.mxu0 0.0
    %151 = vmatpush1.msra.mxu0 0.0
    %152 = vmatprep.subr.mxu0 0.0
    %153 = vmatpush1.msra.mxu0 0.0
    %154 = vmatprep.subr.mxu0 0.0
    %155 = vmatpush1.msra.mxu0 0.0
    %156 = vmatprep.subr.mxu0 0.0
    %157 = vmatpush1.msra.mxu0 0.0
    %158 = vmatprep.subr.mxu0 0.0
    %159 = vmatpush1.msra.mxu0 0.0
    %160 = vmatprep.subr.mxu0 0.0
    %161 = vmatpush1.msra.mxu0 0.0
    %162 = vmatprep.subr.mxu0 0.0
    %163 = vmatpush1.msra.mxu0 0.0
    %164 = vmatprep.subr.mxu0 0.0
    %165 = vmatpush1.msra.mxu0 0.0
    %166 = vmatprep.subr.mxu0 0.0
    %167 = vmatpush1.msra.mxu0 0.0
    %168 = vmatprep.subr.mxu0 0.0
    %169 = vmatpush1.msra.mxu0 0.0
    %170 = vmatprep.subr.mxu0 0.0
    %171 = vmatpush1.msra.mxu0 0.0
    %172 = vmatprep.subr.mxu0 0.0
    %173 = vmatpush1.msra.mxu0 0.0
    %174 = vmatprep.subr.mxu0 0.0
    %175 = vmatpush1.msra.mxu0 0.0
    %176 = vmatprep.subr.mxu0 0.0
    %177 = vmatpush1.msra.mxu0 0.0
    %178 = vmatprep.subr.mxu0 0.0
    %179 = vmatpush1.msra.mxu0 0.0
    %180 = vmatprep.mubr.f32.mxu0 0.0
    %181 = vmatmul.mubr.f32.gmra.mrb[0].mxu0 %v96
    %v182 = vpop.f32.mrb[0].mxu0
    %v183 = vadd.f32 %v59, %v182
    %v184 = vpop.f32.mrb[0].mxu0
    %v185 = vadd.f32 %v59, %v184
    %186 = vmatprep.mubr.f32.mxu0 0.0
    %187 = vmatmul.mubr.f32.gmra.mrb[0].mxu0 %v99
    %v188 = vpop.f32.mrb[0].mxu0
    %v189 = vadd.f32 %v64, %v188
    %v190 = vpop.f32.mrb[0].mxu0
    %v191 = vadd.f32 %v64, %v190
    %192 = vmatprep.mubr.f32.mxu0 0.0
    %193 = vmatmul.mubr.f32.gmra.mrb[0].mxu0 %v102
    %v194 = vpop.f32.mrb[0].mxu0
    %v195 = vadd.f32 %v69, %v194
    %v196 = vpop.f32.mrb[0].mxu0
    %v197 = vadd.f32 %v69, %v196
    %198 = vmatprep.mubr.f32.mxu0 0.0
    %199 = vmatmul.mubr.f32.gmra.mrb[0].mxu0 %v105
    %v200 = vpop.f32.mrb[0].mxu0
    %v201 = vadd.f32 %v74, %v200
    %v202 = vpop.f32.mrb[0].mxu0
    %v203 = vadd.f32 %v74, %v202
    %204 = vdwg.mxu0
    %205 = vmatprep.subr.mxu0 %v114
    %206 = vmatpush1.msra.mxu0 %v112
    %207 = vmatprep.subr.mxu0 0.0
    %208 = vmatpush1.msra.mxu0 0.0
    %209 = vmatprep.subr.mxu0 0.0
    %210 = vmatpush1.msra.mxu0 0.0
    %211 = vmatprep.subr.mxu0 0.0
    %212 = vmatpush1.msra.mxu0 0.0
    %213 = vmatprep.subr.mxu0 0.0
    %214 = vmatpush1.msra.mxu0 0.0
    %215 = vmatprep.subr.mxu0 0.0
    %216 = vmatpush1.msra.mxu0 0.0
    %217 = vmatprep.subr.mxu0 0.0
    %218 = vmatpush1.msra.mxu0 0.0
    %219 = vmatprep.subr.mxu0 0.0
    %220 = vmatpush1.msra.mxu0 0.0
    %221 = vmatprep.subr.mxu0 0.0
    %222 = vmatpush1.msra.mxu0 0.0
    %223 = vmatprep.subr.mxu0 0.0
    %224 = vmatpush1.msra.mxu0 0.0
    %225 = vmatprep.subr.mxu0 0.0
    %226 = vmatpush1.msra.mxu0 0.0
    %227 = vmatprep.subr.mxu0 0.0
    %228 = vmatpush1.msra.mxu0 0.0
    %229 = vmatprep.subr.mxu0 0.0
    %230 = vmatpush1.msra.mxu0 0.0
    %231 = vmatprep.subr.mxu0 0.0
    %232 = vmatpush1.msra.mxu0 0.0
    %233 = vmatprep.subr.mxu0 0.0
    %234 = vmatpush1.msra.mxu0 0.0
    %235 = vmatprep.subr.mxu0 0.0
    %236 = vmatpush1.msra.mxu0 0.0
    %237 = vmatprep.subr.mxu0 0.0
    %238 = vmatpush1.msra.mxu0 0.0
    %239 = vmatprep.subr.mxu0 0.0
    %240 = vmatpush1.msra.mxu0 0.0
    %241 = vmatprep.subr.mxu0 0.0
    %242 = vmatpush1.msra.mxu0 0.0
    %243 = vmatprep.subr.mxu0 0.0
    %244 = vmatpush1.msra.mxu0 0.0
    %245 = vmatprep.subr.mxu0 0.0
    %246 = vmatpush1.msra.mxu0 0.0
    %247 = vmatprep.subr.mxu0 0.0
    %248 = vmatpush1.msra.mxu0 0.0
    %249 = vmatprep.subr.mxu0 0.0
    %250 = vmatpush1.msra.mxu0 0.0
    %251 = vmatprep.subr.mxu0 0.0
    %252 = vmatpush1.msra.mxu0 0.0
    %253 = vmatprep.subr.mxu0 0.0
    %254 = vmatpush1.msra.mxu0 0.0
    %255 = vmatprep.subr.mxu0 0.0
    %256 = vmatpush1.msra.mxu0 0.0
    %257 = vmatprep.subr.mxu0 0.0
    %258 = vmatpush1.msra.mxu0 0.0
    %259 = vmatprep.subr.mxu0 0.0
    %260 = vmatpush1.msra.mxu0 0.0
    %261 = vmatprep.subr.mxu0 0.0
    %262 = vmatpush1.msra.mxu0 0.0
    %263 = vmatprep.subr.mxu0 0.0
    %264 = vmatpush1.msra.mxu0 0.0
    %265 = vmatprep.subr.mxu0 0.0
    %266 = vmatpush1.msra.mxu0 0.0
    %267 = vmatprep.subr.mxu0 0.0
    %268 = vmatpush1.msra.mxu0 0.0
    %269 = vmatprep.mubr.f32.mxu0 0.0
    %270 = vmatmul.mubr.f32.gmra.mrb[0].mxu0 %v96
    %v271 = vpop.f32.mrb[0].mxu0
    %v272 = vadd.f32 %v59, %v271
    %v273 = vpop.f32.mrb[0].mxu0
    %v274 = vadd.f32 %v59, %v273
    %275 = vmatprep.mubr.f32.mxu0 0.0
    %276 = vmatmul.mubr.f32.gmra.mrb[0].mxu0 %v99
    %v277 = vpop.f32.mrb[0].mxu0
    %v278 = vadd.f32 %v64, %v277
    %v279 = vpop.f32.mrb[0].mxu0
    %v280 = vadd.f32 %v64, %v279
    %281 = vmatprep.mubr.f32.mxu0 0.0
    %282 = vmatmul.mubr.f32.gmra.mrb[0].mxu0 %v102
    %v283 = vpop.f32.mrb[0].mxu0
    %v284 = vadd.f32 %v69, %v283
    %v285 = vpop.f32.mrb[0].mxu0
    %v286 = vadd.f32 %v69, %v285
    %287 = vmatprep.mubr.f32.mxu0 0.0
    %288 = vmatmul.mubr.f32.gmra.mrb[0].mxu0 %v105
    %v289 = vpop.f32.mrb[0].mxu0
    %v290 = vadd.f32 %v74, %v289
    %v291 = vpop.f32.mrb[0].mxu0
    %v292 = vadd.f32 %v74, %v291
    %293 = vdwg.mxu0
    %v295 = vlaneseq
    %v296 = vshrl.u32 %v295, 7
    %v297 = vsub.s32 0, %v296
    %v298 = vrot.slane %v38, %v297
    %v299 = vlaneseq
    %v300 = vshrl.u32 %v299, 7
    %v301 = vsub.s32 1, %v300
    %v302 = vrot.slane %v38, %v301
    %v303 = vlaneseq
    %v304 = vshrl.u32 %v303, 7
    %v305 = vsub.s32 2, %v304
    %v306 = vrot.slane %v38, %v305
    %v307 = vlaneseq
    %v308 = vshrl.u32 %v307, 7
    %v309 = vsub.s32 3, %v308
    %v310 = vrot.slane %v38, %v309
    %v315 = vmul.f32 %v298, %v183
    %v316 = vmul.f32 %v302, %v185
    %v317 = vmul.f32 %v306, %v272
    %v318 = vmul.f32 %v310, %v274
    %v319 = vmul.f32 %v298, %v189
    %v320 = vmul.f32 %v302, %v191
    %v321 = vmul.f32 %v306, %v278
    %v322 = vmul.f32 %v310, %v280
    %v323 = vmul.f32 %v298, %v195
    %v324 = vmul.f32 %v302, %v197
    %v325 = vmul.f32 %v306, %v284
    %v326 = vmul.f32 %v310, %v286
    %v327 = vmul.f32 %v298, %v201
    %v328 = vmul.f32 %v302, %v203
    %v329 = vmul.f32 %v306, %v290
    %v330 = vmul.f32 %v310, %v292
    %v331 = vld [vmem:[%s5] sm:$0xff]
    %v332 = vld [vmem:[%s5 + $0x8] sm:$0xff]
    %v333 = vld [vmem:[%s5 + $0x10] sm:$0xff]
    %v334 = vld [vmem:[%s5 + $0x18] sm:$0xff]
    %336 = vset.pattern.permute.xlu0 0
    %337 = vperm.xlu0 %336, %v331
    %v338 = vpop.permute.xlu0 %337
    %341 = vset.pattern.permute.xlu0 0
    %342 = vperm.xlu0 %341, %v332
    %v343 = vpop.permute.xlu0 %342
    %346 = vset.pattern.permute.xlu0 0
    %347 = vperm.xlu0 %346, %v333
    %v348 = vpop.permute.xlu0 %347
    %351 = vset.pattern.permute.xlu0 0
    %352 = vperm.xlu0 %351, %v334
    %v353 = vpop.permute.xlu0 %352
    %v355 = vadd.f32 %v315, %v338
    %v356 = vadd.f32 %v316, %v338
    %v357 = vadd.f32 %v317, %v338
    %v358 = vadd.f32 %v318, %v338
    %v359 = vadd.f32 %v319, %v343
    %v360 = vadd.f32 %v320, %v343
    %v361 = vadd.f32 %v321, %v343
    %v362 = vadd.f32 %v322, %v343
    %v363 = vadd.f32 %v323, %v348
    %v364 = vadd.f32 %v324, %v348
    %v365 = vadd.f32 %v325, %v348
    %v366 = vadd.f32 %v326, %v348
    %v367 = vadd.f32 %v327, %v353
    %v368 = vadd.f32 %v328, %v353
    %v369 = vadd.f32 %v329, %v353
    %v370 = vadd.f32 %v330, %v353
    %371 = vrot.lane.b32.xlu0 %v355, 17
    %v372 = vpop.permute.xlu0 %371
    %373 = vrot.lane.b32.xlu0 %v359, 17
    %v374 = vpop.permute.xlu0 %373
    %375 = vrot.lane.b32.xlu0 %v363, 17
    %v376 = vpop.permute.xlu0 %375
    %377 = vrot.lane.b32.xlu0 %v367, 17
    %v378 = vpop.permute.xlu0 %377
    %379 = vrot.lane.b32.xlu0 %v356, 17
    %v380 = vpop.permute.xlu0 %379
    %381 = vrot.lane.b32.xlu0 %v360, 17
    %v382 = vpop.permute.xlu0 %381
    %383 = vrot.lane.b32.xlu0 %v364, 17
    %v384 = vpop.permute.xlu0 %383
    %385 = vrot.lane.b32.xlu0 %v368, 17
    %v386 = vpop.permute.xlu0 %385
    %387 = vrot.lane.b32.xlu0 %v357, 17
    %v388 = vpop.permute.xlu0 %387
    %389 = vrot.lane.b32.xlu0 %v361, 17
    %v390 = vpop.permute.xlu0 %389
    %391 = vrot.lane.b32.xlu0 %v365, 17
    %v392 = vpop.permute.xlu0 %391
    %393 = vrot.lane.b32.xlu0 %v369, 17
    %v394 = vpop.permute.xlu0 %393
    %395 = vrot.lane.b32.xlu0 %v358, 17
    %v396 = vpop.permute.xlu0 %395
    %397 = vrot.lane.b32.xlu0 %v362, 17
    %v398 = vpop.permute.xlu0 %397
    %399 = vrot.lane.b32.xlu0 %v366, 17
    %v400 = vpop.permute.xlu0 %399
    %401 = vrot.lane.b32.xlu0 %v370, 17
    %v402 = vpop.permute.xlu0 %401
    %v403 = vlaneseq
    %v404 = vand.u32 %v403, 127
    %vm405 = vcmp.lt.s32.totalorder %v404, 17
    %v406 = vsel %vm405, %v388, %v396
    %v407 = vsel %vm405, %v390, %v398
    %v408 = vsel %vm405, %v392, %v400
    %v409 = vsel %vm405, %v394, %v402
    %v410 = vsel %vm405, %v380, %v388
    %v411 = vsel %vm405, %v382, %v390
    %v412 = vsel %vm405, %v384, %v392
    %v413 = vsel %vm405, %v386, %v394
    %v414 = vsel %vm405, %v372, %v380
    %v415 = vsel %vm405, %v374, %v382
    %v416 = vsel %vm405, %v376, %v384
    %v417 = vsel %vm405, %v378, %v386
    %v418 = vsel %vm405, %v396, %v372
    %v419 = vsel %vm405, %v398, %v374
    %v420 = vsel %vm405, %v400, %v376
    %v421 = vsel %vm405, %v402, %v378
    %v423 = vlaneseq
    %v424 = vshrl.u32 %v423, 7
    %v425 = vsub.s32 0, %v424
    %v426 = vrot.slane %v39, %v425
    %v427 = vlaneseq
    %v428 = vshrl.u32 %v427, 7
    %v429 = vsub.s32 1, %v428
    %v430 = vrot.slane %v39, %v429
    %v431 = vlaneseq
    %v432 = vshrl.u32 %v431, 7
    %v433 = vsub.s32 2, %v432
    %v434 = vrot.slane %v39, %v433
    %v435 = vlaneseq
    %v436 = vshrl.u32 %v435, 7
    %v437 = vsub.s32 3, %v436
    %v438 = vrot.slane %v39, %v437
    %v443 = vmul.f32 %v418, %v426
    %v444 = vmul.f32 %v414, %v430
    %v445 = vmul.f32 %v410, %v434
    %v446 = vmul.f32 %v406, %v438
    %v447 = vmul.f32 %v419, %v426
    %v448 = vmul.f32 %v415, %v430
    %v449 = vmul.f32 %v411, %v434
    %v450 = vmul.f32 %v407, %v438
    %v451 = vmul.f32 %v420, %v426
    %v452 = vmul.f32 %v416, %v430
    %v453 = vmul.f32 %v412, %v434
    %v454 = vmul.f32 %v408, %v438
    %v455 = vmul.f32 %v421, %v426
    %v456 = vmul.f32 %v417, %v430
    %v457 = vmul.f32 %v413, %v434
    %v458 = vmul.f32 %v409, %v438
    %v459 = vpack.c.bf16 %v447, %v443
    %v460 = vpack.c.bf16 %v448, %v444
    %v461 = vpack.c.bf16 %v449, %v445
    %v462 = vpack.c.bf16 %v450, %v446
    %v463 = vpack.c.bf16 %v455, %v451
    %v464 = vpack.c.bf16 %v456, %v452
    %v465 = vpack.c.bf16 %v457, %v453
    %v466 = vpack.c.bf16 %v458, %v454
    %467 = vrot.lane.b32.xlu0 %v355, 16
    %v468 = vpop.permute.xlu0 %467
    %469 = vrot.lane.b32.xlu0 %v359, 16
    %v470 = vpop.permute.xlu0 %469
    %471 = vrot.lane.b32.xlu0 %v363, 16
    %v472 = vpop.permute.xlu0 %471
    %473 = vrot.lane.b32.xlu0 %v367, 16
    %v474 = vpop.permute.xlu0 %473
    %475 = vrot.lane.b32.xlu0 %v356, 16
    %v476 = vpop.permute.xlu0 %475
    %477 = vrot.lane.b32.xlu0 %v360, 16
    %v478 = vpop.permute.xlu0 %477
    %479 = vrot.lane.b32.xlu0 %v364, 16
    %v480 = vpop.permute.xlu0 %479
    %481 = vrot.lane.b32.xlu0 %v368, 16
    %v482 = vpop.permute.xlu0 %481
    %483 = vrot.lane.b32.xlu0 %v357, 16
    %v484 = vpop.permute.xlu0 %483
    %485 = vrot.lane.b32.xlu0 %v361, 16
    %v486 = vpop.permute.xlu0 %485
    %487 = vrot.lane.b32.xlu0 %v365, 16
    %v488 = vpop.permute.xlu0 %487
    %489 = vrot.lane.b32.xlu0 %v369, 16
    %v490 = vpop.permute.xlu0 %489
    %491 = vrot.lane.b32.xlu0 %v358, 16
    %v492 = vpop.permute.xlu0 %491
    %493 = vrot.lane.b32.xlu0 %v362, 16
    %v494 = vpop.permute.xlu0 %493
    %495 = vrot.lane.b32.xlu0 %v366, 16
    %v496 = vpop.permute.xlu0 %495
    %497 = vrot.lane.b32.xlu0 %v370, 16
    %v498 = vpop.permute.xlu0 %497
    %vm499 = vcmp.lt.s32.totalorder %v404, 16
    %v500 = vsel %vm499, %v484, %v492
    %v501 = vsel %vm499, %v486, %v494
    %v502 = vsel %vm499, %v488, %v496
    %v503 = vsel %vm499, %v490, %v498
    %v504 = vsel %vm499, %v476, %v484
    %v505 = vsel %vm499, %v478, %v486
    %v506 = vsel %vm499, %v480, %v488
    %v507 = vsel %vm499, %v482, %v490
    %v508 = vsel %vm499, %v468, %v476
    %v509 = vsel %vm499, %v470, %v478
    %v510 = vsel %vm499, %v472, %v480
    %v511 = vsel %vm499, %v474, %v482
    %v512 = vsel %vm499, %v492, %v468
    %v513 = vsel %vm499, %v494, %v470
    %v514 = vsel %vm499, %v496, %v472
    %v515 = vsel %vm499, %v498, %v474
    %v517 = vlaneseq
    %v518 = vshrl.u32 %v517, 7
    %v519 = vsub.s32 0, %v518
    %v520 = vrot.slane %v40, %v519
    %v521 = vlaneseq
    %v522 = vshrl.u32 %v521, 7
    %v523 = vsub.s32 1, %v522
    %v524 = vrot.slane %v40, %v523
    %v525 = vlaneseq
    %v526 = vshrl.u32 %v525, 7
    %v527 = vsub.s32 2, %v526
    %v528 = vrot.slane %v40, %v527
    %v529 = vlaneseq
    %v530 = vshrl.u32 %v529, 7
    %v531 = vsub.s32 3, %v530
    %v532 = vrot.slane %v40, %v531
    %v537 = vmul.f32 %v512, %v520
    %v538 = vmul.f32 %v508, %v524
    %v539 = vmul.f32 %v504, %v528
    %v540 = vmul.f32 %v500, %v532
    %v541 = vmul.f32 %v513, %v520
    %v542 = vmul.f32 %v509, %v524
    %v543 = vmul.f32 %v505, %v528
    %v544 = vmul.f32 %v501, %v532
    %v545 = vmul.f32 %v514, %v520
    %v546 = vmul.f32 %v510, %v524
    %v547 = vmul.f32 %v506, %v528
    %v548 = vmul.f32 %v502, %v532
    %v549 = vmul.f32 %v515, %v520
    %v550 = vmul.f32 %v511, %v524
    %v551 = vmul.f32 %v507, %v528
    %v552 = vmul.f32 %v503, %v532
    %v553 = vpack.c.bf16 %v541, %v537
    %v554 = vpack.c.bf16 %v542, %v538
    %v555 = vpack.c.bf16 %v543, %v539
    %v556 = vpack.c.bf16 %v544, %v540
    %v557 = vpack.c.bf16 %v549, %v545
    %v558 = vpack.c.bf16 %v550, %v546
    %v559 = vpack.c.bf16 %v551, %v547
    %v560 = vpack.c.bf16 %v552, %v548
    %561 = vrot.lane.b32.xlu0 %v355, 15
    %v562 = vpop.permute.xlu0 %561
    %563 = vrot.lane.b32.xlu0 %v359, 15
    %v564 = vpop.permute.xlu0 %563
    %565 = vrot.lane.b32.xlu0 %v363, 15
    %v566 = vpop.permute.xlu0 %565
    %567 = vrot.lane.b32.xlu0 %v367, 15
    %v568 = vpop.permute.xlu0 %567
    %569 = vrot.lane.b32.xlu0 %v356, 15
    %v570 = vpop.permute.xlu0 %569
    %571 = vrot.lane.b32.xlu0 %v360, 15
    %v572 = vpop.permute.xlu0 %571
    %573 = vrot.lane.b32.xlu0 %v364, 15
    %v574 = vpop.permute.xlu0 %573
    %575 = vrot.lane.b32.xlu0 %v368, 15
    %v576 = vpop.permute.xlu0 %575
    %577 = vrot.lane.b32.xlu0 %v357, 15
    %v578 = vpop.permute.xlu0 %577
    %579 = vrot.lane.b32.xlu0 %v361, 15
    %v580 = vpop.permute.xlu0 %579
    %581 = vrot.lane.b32.xlu0 %v365, 15
    %v582 = vpop.permute.xlu0 %581
    %583 = vrot.lane.b32.xlu0 %v369, 15
    %v584 = vpop.permute.xlu0 %583
    %585 = vrot.lane.b32.xlu0 %v358, 15
    %v586 = vpop.permute.xlu0 %585
    %587 = vrot.lane.b32.xlu0 %v362, 15
    %v588 = vpop.permute.xlu0 %587
    %589 = vrot.lane.b32.xlu0 %v366, 15
    %v590 = vpop.permute.xlu0 %589
    %591 = vrot.lane.b32.xlu0 %v370, 15
    %v592 = vpop.permute.xlu0 %591
    %vm593 = vcmp.lt.s32.totalorder %v404, 15
    %v594 = vsel %vm593, %v578, %v586
    %v595 = vsel %vm593, %v580, %v588
    %v596 = vsel %vm593, %v582, %v590
    %v597 = vsel %vm593, %v584, %v592
    %v598 = vsel %vm593, %v570, %v578
    %v599 = vsel %vm593, %v572, %v580
    %v600 = vsel %vm593, %v574, %v582
    %v601 = vsel %vm593, %v576, %v584
    %v602 = vsel %vm593, %v562, %v570
    %v603 = vsel %vm593, %v564, %v572
    %v604 = vsel %vm593, %v566, %v574
    %v605 = vsel %vm593, %v568, %v576
    %v606 = vsel %vm593, %v586, %v562
    %v607 = vsel %vm593, %v588, %v564
    %v608 = vsel %vm593, %v590, %v566
    %v609 = vsel %vm593, %v592, %v568
    %v611 = vlaneseq
    %v612 = vshrl.u32 %v611, 7
    %v613 = vsub.s32 0, %v612
    %v614 = vrot.slane %v41, %v613
    %v615 = vlaneseq
    %v616 = vshrl.u32 %v615, 7
    %v617 = vsub.s32 1, %v616
    %v618 = vrot.slane %v41, %v617
    %v619 = vlaneseq
    %v620 = vshrl.u32 %v619, 7
    %v621 = vsub.s32 2, %v620
    %v622 = vrot.slane %v41, %v621
    %v623 = vlaneseq
    %v624 = vshrl.u32 %v623, 7
    %v625 = vsub.s32 3, %v624
    %v626 = vrot.slane %v41, %v625
    %v631 = vmul.f32 %v606, %v614
    %v632 = vmul.f32 %v602, %v618
    %v633 = vmul.f32 %v598, %v622
    %v634 = vmul.f32 %v594, %v626
    %v635 = vmul.f32 %v607, %v614
    %v636 = vmul.f32 %v603, %v618
    %v637 = vmul.f32 %v599, %v622
    %v638 = vmul.f32 %v595, %v626
    %v639 = vmul.f32 %v608, %v614
    %v640 = vmul.f32 %v604, %v618
    %v641 = vmul.f32 %v600, %v622
    %v642 = vmul.f32 %v596, %v626
    %v643 = vmul.f32 %v609, %v614
    %v644 = vmul.f32 %v605, %v618
    %v645 = vmul.f32 %v601, %v622
    %v646 = vmul.f32 %v597, %v626
    %v647 = vpack.c.bf16 %v635, %v631
    %v648 = vpack.c.bf16 %v636, %v632
    %v649 = vpack.c.bf16 %v637, %v633
    %v650 = vpack.c.bf16 %v638, %v634
    %v651 = vpack.c.bf16 %v643, %v639
    %v652 = vpack.c.bf16 %v644, %v640
    %v653 = vpack.c.bf16 %v645, %v641
    %v654 = vpack.c.bf16 %v646, %v642
    %655 = vrot.lane.b32.xlu0 %v355, 1
    %v656 = vpop.permute.xlu0 %655
    %657 = vrot.lane.b32.xlu0 %v359, 1
    %v658 = vpop.permute.xlu0 %657
    %659 = vrot.lane.b32.xlu0 %v363, 1
    %v660 = vpop.permute.xlu0 %659
    %661 = vrot.lane.b32.xlu0 %v367, 1
    %v662 = vpop.permute.xlu0 %661
    %663 = vrot.lane.b32.xlu0 %v356, 1
    %v664 = vpop.permute.xlu0 %663
    %665 = vrot.lane.b32.xlu0 %v360, 1
    %v666 = vpop.permute.xlu0 %665
    %667 = vrot.lane.b32.xlu0 %v364, 1
    %v668 = vpop.permute.xlu0 %667
    %669 = vrot.lane.b32.xlu0 %v368, 1
    %v670 = vpop.permute.xlu0 %669
    %671 = vrot.lane.b32.xlu0 %v357, 1
    %v672 = vpop.permute.xlu0 %671
    %673 = vrot.lane.b32.xlu0 %v361, 1
    %v674 = vpop.permute.xlu0 %673
    %675 = vrot.lane.b32.xlu0 %v365, 1
    %v676 = vpop.permute.xlu0 %675
    %677 = vrot.lane.b32.xlu0 %v369, 1
    %v678 = vpop.permute.xlu0 %677
    %679 = vrot.lane.b32.xlu0 %v358, 1
    %v680 = vpop.permute.xlu0 %679
    %681 = vrot.lane.b32.xlu0 %v362, 1
    %v682 = vpop.permute.xlu0 %681
    %683 = vrot.lane.b32.xlu0 %v366, 1
    %v684 = vpop.permute.xlu0 %683
    %685 = vrot.lane.b32.xlu0 %v370, 1
    %v686 = vpop.permute.xlu0 %685
    %vm687 = vcmp.lt.s32.totalorder %v404, 1
    %v688 = vsel %vm687, %v672, %v680
    %v689 = vsel %vm687, %v674, %v682
    %v690 = vsel %vm687, %v676, %v684
    %v691 = vsel %vm687, %v678, %v686
    %v692 = vsel %vm687, %v664, %v672
    %v693 = vsel %vm687, %v666, %v674
    %v694 = vsel %vm687, %v668, %v676
    %v695 = vsel %vm687, %v670, %v678
    %v696 = vsel %vm687, %v656, %v664
    %v697 = vsel %vm687, %v658, %v666
    %v698 = vsel %vm687, %v660, %v668
    %v699 = vsel %vm687, %v662, %v670
    %v700 = vsel %vm687, %v680, %v656
    %v701 = vsel %vm687, %v682, %v658
    %v702 = vsel %vm687, %v684, %v660
    %v703 = vsel %vm687, %v686, %v662
    %v705 = vlaneseq
    %v706 = vshrl.u32 %v705, 7
    %v707 = vsub.s32 0, %v706
    %v708 = vrot.slane %v42, %v707
    %v709 = vlaneseq
    %v710 = vshrl.u32 %v709, 7
    %v711 = vsub.s32 1, %v710
    %v712 = vrot.slane %v42, %v711
    %v713 = vlaneseq
    %v714 = vshrl.u32 %v713, 7
    %v715 = vsub.s32 2, %v714
    %v716 = vrot.slane %v42, %v715
    %v717 = vlaneseq
    %v718 = vshrl.u32 %v717, 7
    %v719 = vsub.s32 3, %v718
    %v720 = vrot.slane %v42, %v719
    %v725 = vmul.f32 %v700, %v708
    %v726 = vmul.f32 %v696, %v712
    %v727 = vmul.f32 %v692, %v716
    %v728 = vmul.f32 %v688, %v720
    %v729 = vmul.f32 %v701, %v708
    %v730 = vmul.f32 %v697, %v712
    %v731 = vmul.f32 %v693, %v716
    %v732 = vmul.f32 %v689, %v720
    %v733 = vmul.f32 %v702, %v708
    %v734 = vmul.f32 %v698, %v712
    %v735 = vmul.f32 %v694, %v716
    %v736 = vmul.f32 %v690, %v720
    %v737 = vmul.f32 %v703, %v708
    %v738 = vmul.f32 %v699, %v712
    %v739 = vmul.f32 %v695, %v716
    %v740 = vmul.f32 %v691, %v720
    %v741 = vpack.c.bf16 %v729, %v725
    %v742 = vpack.c.bf16 %v730, %v726
    %v743 = vpack.c.bf16 %v731, %v727
    %v744 = vpack.c.bf16 %v732, %v728
    %v745 = vpack.c.bf16 %v737, %v733
    %v746 = vpack.c.bf16 %v738, %v734
    %v747 = vpack.c.bf16 %v739, %v735
    %v748 = vpack.c.bf16 %v740, %v736
    %v750 = vlaneseq
    %v751 = vshrl.u32 %v750, 7
    %v752 = vsub.s32 0, %v751
    %v753 = vrot.slane %v43, %v752
    %v754 = vlaneseq
    %v755 = vshrl.u32 %v754, 7
    %v756 = vsub.s32 1, %v755
    %v757 = vrot.slane %v43, %v756
    %v758 = vlaneseq
    %v759 = vshrl.u32 %v758, 7
    %v760 = vsub.s32 2, %v759
    %v761 = vrot.slane %v43, %v760
    %v762 = vlaneseq
    %v763 = vshrl.u32 %v762, 7
    %v764 = vsub.s32 3, %v763
    %v765 = vrot.slane %v43, %v764
    %v770 = vmul.f32 %v355, %v753
    %v771 = vmul.f32 %v356, %v757
    %v772 = vmul.f32 %v357, %v761
    %v773 = vmul.f32 %v358, %v765
    %v774 = vmul.f32 %v359, %v753
    %v775 = vmul.f32 %v360, %v757
    %v776 = vmul.f32 %v361, %v761
    %v777 = vmul.f32 %v362, %v765
    %v778 = vmul.f32 %v363, %v753
    %v779 = vmul.f32 %v364, %v757
    %v780 = vmul.f32 %v365, %v761
    %v781 = vmul.f32 %v366, %v765
    %v782 = vmul.f32 %v367, %v753
    %v783 = vmul.f32 %v368, %v757
    %v784 = vmul.f32 %v369, %v761
    %v785 = vmul.f32 %v370, %v765
    %v786 = vpack.c.bf16 %v774, %v770
    %v787 = vpack.c.bf16 %v775, %v771
    %v788 = vpack.c.bf16 %v776, %v772
    %v789 = vpack.c.bf16 %v777, %v773
    %v790 = vpack.c.bf16 %v782, %v778
    %v791 = vpack.c.bf16 %v783, %v779
    %v792 = vpack.c.bf16 %v784, %v780
    %v793 = vpack.c.bf16 %v785, %v781
    %794 = vrot.lane.b32.xlu0 %v355, 127
    %v795 = vpop.permute.xlu0 %794
    %796 = vrot.lane.b32.xlu0 %v359, 127
    %v797 = vpop.permute.xlu0 %796
    %798 = vrot.lane.b32.xlu0 %v363, 127
    %v799 = vpop.permute.xlu0 %798
    %800 = vrot.lane.b32.xlu0 %v367, 127
    %v801 = vpop.permute.xlu0 %800
    %802 = vrot.lane.b32.xlu0 %v356, 127
    %v803 = vpop.permute.xlu0 %802
    %804 = vrot.lane.b32.xlu0 %v360, 127
    %v805 = vpop.permute.xlu0 %804
    %806 = vrot.lane.b32.xlu0 %v364, 127
    %v807 = vpop.permute.xlu0 %806
    %808 = vrot.lane.b32.xlu0 %v368, 127
    %v809 = vpop.permute.xlu0 %808
    %810 = vrot.lane.b32.xlu0 %v357, 127
    %v811 = vpop.permute.xlu0 %810
    %812 = vrot.lane.b32.xlu0 %v361, 127
    %v813 = vpop.permute.xlu0 %812
    %814 = vrot.lane.b32.xlu0 %v365, 127
    %v815 = vpop.permute.xlu0 %814
    %816 = vrot.lane.b32.xlu0 %v369, 127
    %v817 = vpop.permute.xlu0 %816
    %818 = vrot.lane.b32.xlu0 %v358, 127
    %v819 = vpop.permute.xlu0 %818
    %820 = vrot.lane.b32.xlu0 %v362, 127
    %v821 = vpop.permute.xlu0 %820
    %822 = vrot.lane.b32.xlu0 %v366, 127
    %v823 = vpop.permute.xlu0 %822
    %824 = vrot.lane.b32.xlu0 %v370, 127
    %v825 = vpop.permute.xlu0 %824
    %vm826 = vcmp.lt.s32.totalorder %v404, 127
    %v827 = vsel %vm826, %v811, %v819
    %v828 = vsel %vm826, %v813, %v821
    %v829 = vsel %vm826, %v815, %v823
    %v830 = vsel %vm826, %v817, %v825
    %v831 = vsel %vm826, %v803, %v811
    %v832 = vsel %vm826, %v805, %v813
    %v833 = vsel %vm826, %v807, %v815
    %v834 = vsel %vm826, %v809, %v817
    %v835 = vsel %vm826, %v795, %v803
    %v836 = vsel %vm826, %v797, %v805
    %v837 = vsel %vm826, %v799, %v807
    %v838 = vsel %vm826, %v801, %v809
    %v839 = vsel %vm826, %v819, %v795
    %v840 = vsel %vm826, %v821, %v797
    %v841 = vsel %vm826, %v823, %v799
    %v842 = vsel %vm826, %v825, %v801
    %v844 = vlaneseq
    %v845 = vshrl.u32 %v844, 7
    %v846 = vsub.s32 0, %v845
    %v847 = vrot.slane %v44, %v846
    %v848 = vlaneseq
    %v849 = vshrl.u32 %v848, 7
    %v850 = vsub.s32 1, %v849
    %v851 = vrot.slane %v44, %v850
    %v852 = vlaneseq
    %v853 = vshrl.u32 %v852, 7
    %v854 = vsub.s32 2, %v853
    %v855 = vrot.slane %v44, %v854
    %v856 = vlaneseq
    %v857 = vshrl.u32 %v856, 7
    %v858 = vsub.s32 3, %v857
    %v859 = vrot.slane %v44, %v858
    %v864 = vmul.f32 %v835, %v847
    %v865 = vmul.f32 %v831, %v851
    %v866 = vmul.f32 %v827, %v855
    %v867 = vmul.f32 %v839, %v859
    %v868 = vmul.f32 %v836, %v847
    %v869 = vmul.f32 %v832, %v851
    %v870 = vmul.f32 %v828, %v855
    %v871 = vmul.f32 %v840, %v859
    %v872 = vmul.f32 %v837, %v847
    %v873 = vmul.f32 %v833, %v851
    %v874 = vmul.f32 %v829, %v855
    %v875 = vmul.f32 %v841, %v859
    %v876 = vmul.f32 %v838, %v847
    %v877 = vmul.f32 %v834, %v851
    %v878 = vmul.f32 %v830, %v855
    %v879 = vmul.f32 %v842, %v859
    %v880 = vpack.c.bf16 %v868, %v864
    %v881 = vpack.c.bf16 %v869, %v865
    %v882 = vpack.c.bf16 %v870, %v866
    %v883 = vpack.c.bf16 %v871, %v867
    %v884 = vpack.c.bf16 %v876, %v872
    %v885 = vpack.c.bf16 %v877, %v873
    %v886 = vpack.c.bf16 %v878, %v874
    %v887 = vpack.c.bf16 %v879, %v875
    %888 = vrot.lane.b32.xlu0 %v355, 113
    %v889 = vpop.permute.xlu0 %888
    %890 = vrot.lane.b32.xlu0 %v359, 113
    %v891 = vpop.permute.xlu0 %890
    %892 = vrot.lane.b32.xlu0 %v363, 113
    %v893 = vpop.permute.xlu0 %892
    %894 = vrot.lane.b32.xlu0 %v367, 113
    %v895 = vpop.permute.xlu0 %894
    %896 = vrot.lane.b32.xlu0 %v356, 113
    %v897 = vpop.permute.xlu0 %896
    %898 = vrot.lane.b32.xlu0 %v360, 113
    %v899 = vpop.permute.xlu0 %898
    %900 = vrot.lane.b32.xlu0 %v364, 113
    %v901 = vpop.permute.xlu0 %900
    %902 = vrot.lane.b32.xlu0 %v368, 113
    %v903 = vpop.permute.xlu0 %902
    %904 = vrot.lane.b32.xlu0 %v357, 113
    %v905 = vpop.permute.xlu0 %904
    %906 = vrot.lane.b32.xlu0 %v361, 113
    %v907 = vpop.permute.xlu0 %906
    %908 = vrot.lane.b32.xlu0 %v365, 113
    %v909 = vpop.permute.xlu0 %908
    %910 = vrot.lane.b32.xlu0 %v369, 113
    %v911 = vpop.permute.xlu0 %910
    %912 = vrot.lane.b32.xlu0 %v358, 113
    %v913 = vpop.permute.xlu0 %912
    %914 = vrot.lane.b32.xlu0 %v362, 113
    %v915 = vpop.permute.xlu0 %914
    %916 = vrot.lane.b32.xlu0 %v366, 113
    %v917 = vpop.permute.xlu0 %916
    %918 = vrot.lane.b32.xlu0 %v370, 113
    %v919 = vpop.permute.xlu0 %918
    %vm920 = vcmp.lt.s32.totalorder %v404, 113
    %v921 = vsel %vm920, %v905, %v913
    %v922 = vsel %vm920, %v907, %v915
    %v923 = vsel %vm920, %v909, %v917
    %v924 = vsel %vm920, %v911, %v919
    %v925 = vsel %vm920, %v897, %v905
    %v926 = vsel %vm920, %v899, %v907
    %v927 = vsel %vm920, %v901, %v909
    %v928 = vsel %vm920, %v903, %v911
    %v929 = vsel %vm920, %v889, %v897
    %v930 = vsel %vm920, %v891, %v899
    %v931 = vsel %vm920, %v893, %v901
    %v932 = vsel %vm920, %v895, %v903
    %v933 = vsel %vm920, %v913, %v889
    %v934 = vsel %vm920, %v915, %v891
    %v935 = vsel %vm920, %v917, %v893
    %v936 = vsel %vm920, %v919, %v895
    %v938 = vlaneseq
    %v939 = vshrl.u32 %v938, 7
    %v940 = vsub.s32 0, %v939
    %v941 = vrot.slane %v45, %v940
    %v942 = vlaneseq
    %v943 = vshrl.u32 %v942, 7
    %v944 = vsub.s32 1, %v943
    %v945 = vrot.slane %v45, %v944
    %v946 = vlaneseq
    %v947 = vshrl.u32 %v946, 7
    %v948 = vsub.s32 2, %v947
    %v949 = vrot.slane %v45, %v948
    %v950 = vlaneseq
    %v951 = vshrl.u32 %v950, 7
    %v952 = vsub.s32 3, %v951
    %v953 = vrot.slane %v45, %v952
    %v958 = vmul.f32 %v929, %v941
    %v959 = vmul.f32 %v925, %v945
    %v960 = vmul.f32 %v921, %v949
    %v961 = vmul.f32 %v933, %v953
    %v962 = vmul.f32 %v930, %v941
    %v963 = vmul.f32 %v926, %v945
    %v964 = vmul.f32 %v922, %v949
    %v965 = vmul.f32 %v934, %v953
    %v966 = vmul.f32 %v931, %v941
    %v967 = vmul.f32 %v927, %v945
    %v968 = vmul.f32 %v923, %v949
    %v969 = vmul.f32 %v935, %v953
    %v970 = vmul.f32 %v932, %v941
    %v971 = vmul.f32 %v928, %v945
    %v972 = vmul.f32 %v924, %v949
    %v973 = vmul.f32 %v936, %v953
    %v974 = vpack.c.bf16 %v962, %v958
    %v975 = vpack.c.bf16 %v963, %v959
    %v976 = vpack.c.bf16 %v964, %v960
    %v977 = vpack.c.bf16 %v965, %v961
    %v978 = vpack.c.bf16 %v970, %v966
    %v979 = vpack.c.bf16 %v971, %v967
    %v980 = vpack.c.bf16 %v972, %v968
    %v981 = vpack.c.bf16 %v973, %v969
    %982 = vrot.lane.b32.xlu0 %v355, 112
    %v983 = vpop.permute.xlu0 %982
    %984 = vrot.lane.b32.xlu0 %v359, 112
    %v985 = vpop.permute.xlu0 %984
    %986 = vrot.lane.b32.xlu0 %v363, 112
    %v987 = vpop.permute.xlu0 %986
    %988 = vrot.lane.b32.xlu0 %v367, 112
    %v989 = vpop.permute.xlu0 %988
    %990 = vrot.lane.b32.xlu0 %v356, 112
    %v991 = vpop.permute.xlu0 %990
    %992 = vrot.lane.b32.xlu0 %v360, 112
    %v993 = vpop.permute.xlu0 %992
    %994 = vrot.lane.b32.xlu0 %v364, 112
    %v995 = vpop.permute.xlu0 %994
    %996 = vrot.lane.b32.xlu0 %v368, 112
    %v997 = vpop.permute.xlu0 %996
    %998 = vrot.lane.b32.xlu0 %v357, 112
    %v999 = vpop.permute.xlu0 %998
    %1000 = vrot.lane.b32.xlu0 %v361, 112
    %v1001 = vpop.permute.xlu0 %1000
    %1002 = vrot.lane.b32.xlu0 %v365, 112
    %v1003 = vpop.permute.xlu0 %1002
    %1004 = vrot.lane.b32.xlu0 %v369, 112
    %v1005 = vpop.permute.xlu0 %1004
    %1006 = vrot.lane.b32.xlu0 %v358, 112
    %v1007 = vpop.permute.xlu0 %1006
    %1008 = vrot.lane.b32.xlu0 %v362, 112
    %v1009 = vpop.permute.xlu0 %1008
    %1010 = vrot.lane.b32.xlu0 %v366, 112
    %v1011 = vpop.permute.xlu0 %1010
    %1012 = vrot.lane.b32.xlu0 %v370, 112
    %v1013 = vpop.permute.xlu0 %1012
    %vm1014 = vcmp.lt.s32.totalorder %v404, 112
    %v1015 = vsel %vm1014, %v999, %v1007
    %v1016 = vsel %vm1014, %v1001, %v1009
    %v1017 = vsel %vm1014, %v1003, %v1011
    %v1018 = vsel %vm1014, %v1005, %v1013
    %v1019 = vsel %vm1014, %v991, %v999
    %v1020 = vsel %vm1014, %v993, %v1001
    %v1021 = vsel %vm1014, %v995, %v1003
    %v1022 = vsel %vm1014, %v997, %v1005
    %v1023 = vsel %vm1014, %v983, %v991
    %v1024 = vsel %vm1014, %v985, %v993
    %v1025 = vsel %vm1014, %v987, %v995
    %v1026 = vsel %vm1014, %v989, %v997
    %v1027 = vsel %vm1014, %v1007, %v983
    %v1028 = vsel %vm1014, %v1009, %v985
    %v1029 = vsel %vm1014, %v1011, %v987
    %v1030 = vsel %vm1014, %v1013, %v989
    %v1032 = vlaneseq
    %v1033 = vshrl.u32 %v1032, 7
    %v1034 = vsub.s32 0, %v1033
    %v1035 = vrot.slane %v46, %v1034
    %v1036 = vlaneseq
    %v1037 = vshrl.u32 %v1036, 7
    %v1038 = vsub.s32 1, %v1037
    %v1039 = vrot.slane %v46, %v1038
    %v1040 = vlaneseq
    %v1041 = vshrl.u32 %v1040, 7
    %v1042 = vsub.s32 2, %v1041
    %v1043 = vrot.slane %v46, %v1042
    %v1044 = vlaneseq
    %v1045 = vshrl.u32 %v1044, 7
    %v1046 = vsub.s32 3, %v1045
    %v1047 = vrot.slane %v46, %v1046
    %v1052 = vmul.f32 %v1023, %v1035
    %v1053 = vmul.f32 %v1019, %v1039
    %v1054 = vmul.f32 %v1015, %v1043
    %v1055 = vmul.f32 %v1027, %v1047
    %v1056 = vmul.f32 %v1024, %v1035
    %v1057 = vmul.f32 %v1020, %v1039
    %v1058 = vmul.f32 %v1016, %v1043
    %v1059 = vmul.f32 %v1028, %v1047
    %v1060 = vmul.f32 %v1025, %v1035
    %v1061 = vmul.f32 %v1021, %v1039
    %v1062 = vmul.f32 %v1017, %v1043
    %v1063 = vmul.f32 %v1029, %v1047
    %v1064 = vmul.f32 %v1026, %v1035
    %v1065 = vmul.f32 %v1022, %v1039
    %v1066 = vmul.f32 %v1018, %v1043
    %v1067 = vmul.f32 %v1030, %v1047
    %v1068 = vpack.c.bf16 %v1056, %v1052
    %v1069 = vpack.c.bf16 %v1057, %v1053
    %v1070 = vpack.c.bf16 %v1058, %v1054
    %v1071 = vpack.c.bf16 %v1059, %v1055
    %v1072 = vpack.c.bf16 %v1064, %v1060
    %v1073 = vpack.c.bf16 %v1065, %v1061
    %v1074 = vpack.c.bf16 %v1066, %v1062
    %v1075 = vpack.c.bf16 %v1067, %v1063
    %1076 = vrot.lane.b32.xlu0 %v355, 111
    %v1077 = vpop.permute.xlu0 %1076
    %1078 = vrot.lane.b32.xlu0 %v359, 111
    %v1079 = vpop.permute.xlu0 %1078
    %1080 = vrot.lane.b32.xlu0 %v363, 111
    %v1081 = vpop.permute.xlu0 %1080
    %1082 = vrot.lane.b32.xlu0 %v367, 111
    %v1083 = vpop.permute.xlu0 %1082
    %1084 = vrot.lane.b32.xlu0 %v356, 111
    %v1085 = vpop.permute.xlu0 %1084
    %1086 = vrot.lane.b32.xlu0 %v360, 111
    %v1087 = vpop.permute.xlu0 %1086
    %1088 = vrot.lane.b32.xlu0 %v364, 111
    %v1089 = vpop.permute.xlu0 %1088
    %1090 = vrot.lane.b32.xlu0 %v368, 111
    %v1091 = vpop.permute.xlu0 %1090
    %1092 = vrot.lane.b32.xlu0 %v357, 111
    %v1093 = vpop.permute.xlu0 %1092
    %1094 = vrot.lane.b32.xlu0 %v361, 111
    %v1095 = vpop.permute.xlu0 %1094
    %1096 = vrot.lane.b32.xlu0 %v365, 111
    %v1097 = vpop.permute.xlu0 %1096
    %1098 = vrot.lane.b32.xlu0 %v369, 111
    %v1099 = vpop.permute.xlu0 %1098
    %1100 = vrot.lane.b32.xlu0 %v358, 111
    %v1101 = vpop.permute.xlu0 %1100
    %1102 = vrot.lane.b32.xlu0 %v362, 111
    %v1103 = vpop.permute.xlu0 %1102
    %1104 = vrot.lane.b32.xlu0 %v366, 111
    %v1105 = vpop.permute.xlu0 %1104
    %1106 = vrot.lane.b32.xlu0 %v370, 111
    %v1107 = vpop.permute.xlu0 %1106
    %vm1108 = vcmp.lt.s32.totalorder %v404, 111
    %v1109 = vsel %vm1108, %v1093, %v1101
    %v1110 = vsel %vm1108, %v1095, %v1103
    %v1111 = vsel %vm1108, %v1097, %v1105
    %v1112 = vsel %vm1108, %v1099, %v1107
    %v1113 = vsel %vm1108, %v1085, %v1093
    %v1114 = vsel %vm1108, %v1087, %v1095
    %v1115 = vsel %vm1108, %v1089, %v1097
    %v1116 = vsel %vm1108, %v1091, %v1099
    %v1117 = vsel %vm1108, %v1077, %v1085
    %v1118 = vsel %vm1108, %v1079, %v1087
    %v1119 = vsel %vm1108, %v1081, %v1089
    %v1120 = vsel %vm1108, %v1083, %v1091
    %v1121 = vsel %vm1108, %v1101, %v1077
    %v1122 = vsel %vm1108, %v1103, %v1079
    %v1123 = vsel %vm1108, %v1105, %v1081
    %v1124 = vsel %vm1108, %v1107, %v1083
    %v1126 = vlaneseq
    %v1127 = vshrl.u32 %v1126, 7
    %v1128 = vsub.s32 0, %v1127
    %v1129 = vrot.slane %v47, %v1128
    %v1130 = vlaneseq
    %v1131 = vshrl.u32 %v1130, 7
    %v1132 = vsub.s32 1, %v1131
    %v1133 = vrot.slane %v47, %v1132
    %v1134 = vlaneseq
    %v1135 = vshrl.u32 %v1134, 7
    %v1136 = vsub.s32 2, %v1135
    %v1137 = vrot.slane %v47, %v1136
    %v1138 = vlaneseq
    %v1139 = vshrl.u32 %v1138, 7
    %v1140 = vsub.s32 3, %v1139
    %v1141 = vrot.slane %v47, %v1140
    %v1146 = vmul.f32 %v1117, %v1129
    %v1147 = vmul.f32 %v1113, %v1133
    %v1148 = vmul.f32 %v1109, %v1137
    %v1149 = vmul.f32 %v1121, %v1141
    %v1150 = vmul.f32 %v1118, %v1129
    %v1151 = vmul.f32 %v1114, %v1133
    %v1152 = vmul.f32 %v1110, %v1137
    %v1153 = vmul.f32 %v1122, %v1141
    %v1154 = vmul.f32 %v1119, %v1129
    %v1155 = vmul.f32 %v1115, %v1133
    %v1156 = vmul.f32 %v1111, %v1137
    %v1157 = vmul.f32 %v1123, %v1141
    %v1158 = vmul.f32 %v1120, %v1129
    %v1159 = vmul.f32 %v1116, %v1133
    %v1160 = vmul.f32 %v1112, %v1137
    %v1161 = vmul.f32 %v1124, %v1141
    %v1162 = vpack.c.bf16 %v1150, %v1146
    %v1163 = vpack.c.bf16 %v1151, %v1147
    %v1164 = vpack.c.bf16 %v1152, %v1148
    %v1165 = vpack.c.bf16 %v1153, %v1149
    %v1166 = vpack.c.bf16 %v1158, %v1154
    %v1167 = vpack.c.bf16 %v1159, %v1155
    %v1168 = vpack.c.bf16 %v1160, %v1156
    %v1169 = vpack.c.bf16 %v1161, %v1157
    %v1170 = vld [vmem:[%s6] sm:$0xff]
    %v1171 = vld [vmem:[%s6 + $0x8] sm:$0xf]
    %v1172 = vld [vmem:[%s6 + $0xc] sm:$0xff]
    %v1173 = vld [vmem:[%s6 + $0x14] sm:$0xf]
    %v1174 = vld [vmem:[%s6 + $0x18] sm:$0xff]
    %v1175 = vld [vmem:[%s6 + $0x20] sm:$0xf]
    %v1176 = vld [vmem:[%s6 + $0x24] sm:$0xff]
    %v1177 = vld [vmem:[%s6 + $0x2c] sm:$0xf]
    %v1178 = vld [vmem:[%s7] sm:$0xff]
    %v1179 = vld [vmem:[%s7 + $0x8] sm:$0xff]
    %v1180 = vld [vmem:[%s7 + $0x10] sm:$0xff]
    %v1181 = vld [vmem:[%s7 + $0x18] sm:$0xff]
    %1183 = vset.pattern.permute.xlu0 0
    %1184 = vperm.xlu0 %1183, %v1178
    %v1185 = vpop.permute.xlu0 %1184
    %1188 = vset.pattern.permute.xlu0 0
    %1189 = vperm.xlu0 %1188, %v1179
    %v1190 = vpop.permute.xlu0 %1189
    %1193 = vset.pattern.permute.xlu0 0
    %1194 = vperm.xlu0 %1193, %v1180
    %v1195 = vpop.permute.xlu0 %1194
    %1198 = vset.pattern.permute.xlu0 0
    %1199 = vperm.xlu0 %1198, %v1181
    %v1200 = vpop.permute.xlu0 %1199
    %v1210 = vunpack.c.l.b16 %v1170
    %v1211 = vunpack.c.h.b16 %v1170
    %v1212 = vunpack.c.l.b16 %v1171
    %v1213 = vunpack.c.l.b16 %v1172
    %v1214 = vunpack.c.h.b16 %v1172
    %v1215 = vunpack.c.l.b16 %v1173
    %v1216 = vunpack.c.l.b16 %v1174
    %v1217 = vunpack.c.h.b16 %v1174
    %v1218 = vunpack.c.l.b16 %v1175
    %v1219 = vunpack.c.l.b16 %v1176
    %v1220 = vunpack.c.h.b16 %v1176
    %v1221 = vunpack.c.l.b16 %v1177
    %v1222 = vpack.c.b16 %v1213, %v1210
    %v1223 = vpack.c.b16 %v1214, %v1211
    %v1224 = vpack.c.b16 %v1215, %v1212
    %v1225 = vpack.c.b16 %v1219, %v1216
    %v1226 = vpack.c.b16 %v1220, %v1217
    %v1227 = vpack.c.b16 %v1221, %v1218
    %vm1232 = vcmask 261120
    %v1234 = vsel %vm1232, %v1224, 0
    %v1237 = vsel %vm1232, %v1227, 0
    %1239 = vmatprep.subr.bf16.mxu0 %v460
    %1240 = vmatpush1.bf16.msra.mxu0 %v459
    %1241 = vmatprep.subr.bf16.mxu0 %v464
    %1242 = vmatpush1.bf16.msra.mxu0 %v463
    %1243 = vmatprep.subr.bf16.mxu0 %v554
    %1244 = vmatpush1.bf16.msra.mxu0 %v553
    %1245 = vmatprep.subr.bf16.mxu0 %v558
    %1246 = vmatpush1.bf16.msra.mxu0 %v557
    %1247 = vmatprep.subr.bf16.mxu0 %v648
    %1248 = vmatpush1.bf16.msra.mxu0 %v647
    %1249 = vmatprep.subr.bf16.mxu0 %v652
    %1250 = vmatpush1.bf16.msra.mxu0 %v651
    %1251 = vmatprep.subr.bf16.mxu0 %v742
    %1252 = vmatpush1.bf16.msra.mxu0 %v741
    %1253 = vmatprep.subr.bf16.mxu0 %v746
    %1254 = vmatpush1.bf16.msra.mxu0 %v745
    %1255 = vmatprep.subr.bf16.mxu0 %v787
    %1256 = vmatpush1.bf16.msra.mxu0 %v786
    %1257 = vmatprep.subr.bf16.mxu0 %v791
    %1258 = vmatpush1.bf16.msra.mxu0 %v790
    %1259 = vmatprep.subr.bf16.mxu0 %v881
    %1260 = vmatpush1.bf16.msra.mxu0 %v880
    %1261 = vmatprep.subr.bf16.mxu0 %v885
    %1262 = vmatpush1.bf16.msra.mxu0 %v884
    %1263 = vmatprep.subr.bf16.mxu0 %v975
    %1264 = vmatpush1.bf16.msra.mxu0 %v974
    %1265 = vmatprep.subr.bf16.mxu0 %v979
    %1266 = vmatpush1.bf16.msra.mxu0 %v978
    %1267 = vmatprep.subr.bf16.mxu0 %v1069
    %1268 = vmatpush1.bf16.msra.mxu0 %v1068
    %1269 = vmatprep.subr.bf16.mxu0 %v1073
    %1270 = vmatpush1.bf16.msra.mxu0 %v1072
    %1271 = vmatprep.mubr.bf16.mxu0 %v1223
    %1272 = vmatmul.mubr.bf16.gmra.mrb[0].mxu0 %v1222
    %v1273 = vpop.f32.mrb[0].mxu0
    %v1274 = vadd.f32 %v1185, %v1273
    %v1275 = vpop.f32.mrb[0].mxu0
    %v1276 = vadd.f32 %v1185, %v1275
    %v1277 = vpop.f32.mrb[0].mxu0
    %v1278 = vadd.f32 %v1190, %v1277
    %v1279 = vpop.f32.mrb[0].mxu0
    %v1280 = vadd.f32 %v1190, %v1279
    %1281 = vmatprep.mubr.bf16.mxu0 %v1226
    %1282 = vmatmul.mubr.bf16.gmra.mrb[0].mxu0 %v1225
    %v1283 = vpop.f32.mrb[0].mxu0
    %v1284 = vadd.f32 %v1195, %v1283
    %v1285 = vpop.f32.mrb[0].mxu0
    %v1286 = vadd.f32 %v1195, %v1285
    %v1287 = vpop.f32.mrb[0].mxu0
    %v1288 = vadd.f32 %v1200, %v1287
    %v1289 = vpop.f32.mrb[0].mxu0
    %v1290 = vadd.f32 %v1200, %v1289
    %1291 = vdwg.mxu0
    %1292 = vmatprep.subr.bf16.mxu0 %v1163
    %1293 = vmatpush1.bf16.msra.mxu0 %v1162
    %1294 = vmatprep.subr.bf16.mxu0 %v1167
    %1295 = vmatpush1.bf16.msra.mxu0 %v1166
    %1296 = vmatprep.subr.bf16.mxu0 0
    %1297 = vmatpush1.bf16.msra.mxu0 0
    %1298 = vmatprep.subr.bf16.mxu0 0
    %1299 = vmatpush1.bf16.msra.mxu0 0
    %1300 = vmatprep.subr.bf16.mxu0 0
    %1301 = vmatpush1.bf16.msra.mxu0 0
    %1302 = vmatprep.subr.bf16.mxu0 0
    %1303 = vmatpush1.bf16.msra.mxu0 0
    %1304 = vmatprep.subr.bf16.mxu0 0
    %1305 = vmatpush1.bf16.msra.mxu0 0
    %1306 = vmatprep.subr.bf16.mxu0 0
    %1307 = vmatpush1.bf16.msra.mxu0 0
    %1308 = vmatprep.subr.bf16.mxu0 0
    %1309 = vmatpush1.bf16.msra.mxu0 0
    %1310 = vmatprep.subr.bf16.mxu0 0
    %1311 = vmatpush1.bf16.msra.mxu0 0
    %1312 = vmatprep.subr.bf16.mxu0 0
    %1313 = vmatpush1.bf16.msra.mxu0 0
    %1314 = vmatprep.subr.bf16.mxu0 0
    %1315 = vmatpush1.bf16.msra.mxu0 0
    %1316 = vmatprep.subr.bf16.mxu0 0
    %1317 = vmatpush1.bf16.msra.mxu0 0
    %1318 = vmatprep.subr.bf16.mxu0 0
    %1319 = vmatpush1.bf16.msra.mxu0 0
    %1320 = vmatprep.subr.bf16.mxu0 0
    %1321 = vmatpush1.bf16.msra.mxu0 0
    %1322 = vmatprep.subr.bf16.mxu0 0
    %1323 = vmatpush1.bf16.msra.mxu0 0
    %1324 = vmatprep.mubr.bf16.mxu0 0
    %1325 = vmatmul.mubr.bf16.gmra.mrb[0].mxu0 %v1234
    %v1326 = vpop.f32.mrb[0].mxu0
    %v1327 = vadd.f32 %v1274, %v1326
    %v1328 = vpop.f32.mrb[0].mxu0
    %v1329 = vadd.f32 %v1276, %v1328
    %v1330 = vpop.f32.mrb[0].mxu0
    %v1331 = vadd.f32 %v1278, %v1330
    %v1332 = vpop.f32.mrb[0].mxu0
    %v1333 = vadd.f32 %v1280, %v1332
    %1334 = vmatprep.mubr.bf16.mxu0 0
    %1335 = vmatmul.mubr.bf16.gmra.mrb[0].mxu0 %v1237
    %v1336 = vpop.f32.mrb[0].mxu0
    %v1337 = vadd.f32 %v1284, %v1336
    %v1338 = vpop.f32.mrb[0].mxu0
    %v1339 = vadd.f32 %v1286, %v1338
    %v1340 = vpop.f32.mrb[0].mxu0
    %v1341 = vadd.f32 %v1288, %v1340
    %v1342 = vpop.f32.mrb[0].mxu0
    %v1343 = vadd.f32 %v1290, %v1342
    %1344 = vdwg.mxu0
    %1345 = vmatprep.subr.bf16.mxu0 %v462
    %1346 = vmatpush1.bf16.msra.mxu0 %v461
    %1347 = vmatprep.subr.bf16.mxu0 %v466
    %1348 = vmatpush1.bf16.msra.mxu0 %v465
    %1349 = vmatprep.subr.bf16.mxu0 %v556
    %1350 = vmatpush1.bf16.msra.mxu0 %v555
    %1351 = vmatprep.subr.bf16.mxu0 %v560
    %1352 = vmatpush1.bf16.msra.mxu0 %v559
    %1353 = vmatprep.subr.bf16.mxu0 %v650
    %1354 = vmatpush1.bf16.msra.mxu0 %v649
    %1355 = vmatprep.subr.bf16.mxu0 %v654
    %1356 = vmatpush1.bf16.msra.mxu0 %v653
    %1357 = vmatprep.subr.bf16.mxu0 %v744
    %1358 = vmatpush1.bf16.msra.mxu0 %v743
    %1359 = vmatprep.subr.bf16.mxu0 %v748
    %1360 = vmatpush1.bf16.msra.mxu0 %v747
    %1361 = vmatprep.subr.bf16.mxu0 %v789
    %1362 = vmatpush1.bf16.msra.mxu0 %v788
    %1363 = vmatprep.subr.bf16.mxu0 %v793
    %1364 = vmatpush1.bf16.msra.mxu0 %v792
    %1365 = vmatprep.subr.bf16.mxu0 %v883
    %1366 = vmatpush1.bf16.msra.mxu0 %v882
    %1367 = vmatprep.subr.bf16.mxu0 %v887
    %1368 = vmatpush1.bf16.msra.mxu0 %v886
    %1369 = vmatprep.subr.bf16.mxu0 %v977
    %1370 = vmatpush1.bf16.msra.mxu0 %v976
    %1371 = vmatprep.subr.bf16.mxu0 %v981
    %1372 = vmatpush1.bf16.msra.mxu0 %v980
    %1373 = vmatprep.subr.bf16.mxu0 %v1071
    %1374 = vmatpush1.bf16.msra.mxu0 %v1070
    %1375 = vmatprep.subr.bf16.mxu0 %v1075
    %1376 = vmatpush1.bf16.msra.mxu0 %v1074
    %1377 = vmatprep.mubr.bf16.mxu0 %v1223
    %1378 = vmatmul.mubr.bf16.gmra.mrb[0].mxu0 %v1222
    %v1379 = vpop.f32.mrb[0].mxu0
    %v1380 = vadd.f32 %v1185, %v1379
    %v1381 = vpop.f32.mrb[0].mxu0
    %v1382 = vadd.f32 %v1185, %v1381
    %v1383 = vpop.f32.mrb[0].mxu0
    %v1384 = vadd.f32 %v1190, %v1383
    %v1385 = vpop.f32.mrb[0].mxu0
    %v1386 = vadd.f32 %v1190, %v1385
    %1387 = vmatprep.mubr.bf16.mxu0 %v1226
    %1388 = vmatmul.mubr.bf16.gmra.mrb[0].mxu0 %v1225
    %v1389 = vpop.f32.mrb[0].mxu0
    %v1390 = vadd.f32 %v1195, %v1389
    %v1391 = vpop.f32.mrb[0].mxu0
    %v1392 = vadd.f32 %v1195, %v1391
    %v1393 = vpop.f32.mrb[0].mxu0
    %v1394 = vadd.f32 %v1200, %v1393
    %v1395 = vpop.f32.mrb[0].mxu0
    %v1396 = vadd.f32 %v1200, %v1395
    %1397 = vdwg.mxu0
    %1398 = vmatprep.subr.bf16.mxu0 %v1165
    %1399 = vmatpush1.bf16.msra.mxu0 %v1164
    %1400 = vmatprep.subr.bf16.mxu0 %v1169
    %1401 = vmatpush1.bf16.msra.mxu0 %v1168
    %1402 = vmatprep.subr.bf16.mxu0 0
    %1403 = vmatpush1.bf16.msra.mxu0 0
    %1404 = vmatprep.subr.bf16.mxu0 0
    %1405 = vmatpush1.bf16.msra.mxu0 0
    %1406 = vmatprep.subr.bf16.mxu0 0
    %1407 = vmatpush1.bf16.msra.mxu0 0
    %1408 = vmatprep.subr.bf16.mxu0 0
    %1409 = vmatpush1.bf16.msra.mxu0 0
    %1410 = vmatprep.subr.bf16.mxu0 0
    %1411 = vmatpush1.bf16.msra.mxu0 0
    %1412 = vmatprep.subr.bf16.mxu0 0
    %1413 = vmatpush1.bf16.msra.mxu0 0
    %1414 = vmatprep.subr.bf16.mxu0 0
    %1415 = vmatpush1.bf16.msra.mxu0 0
    %1416 = vmatprep.subr.bf16.mxu0 0
    %1417 = vmatpush1.bf16.msra.mxu0 0
    %1418 = vmatprep.subr.bf16.mxu0 0
    %1419 = vmatpush1.bf16.msra.mxu0 0
    %1420 = vmatprep.subr.bf16.mxu0 0
    %1421 = vmatpush1.bf16.msra.mxu0 0
    %1422 = vmatprep.subr.bf16.mxu0 0
    %1423 = vmatpush1.bf16.msra.mxu0 0
    %1424 = vmatprep.subr.bf16.mxu0 0
    %1425 = vmatpush1.bf16.msra.mxu0 0
    %1426 = vmatprep.subr.bf16.mxu0 0
    %1427 = vmatpush1.bf16.msra.mxu0 0
    %1428 = vmatprep.subr.bf16.mxu0 0
    %1429 = vmatpush1.bf16.msra.mxu0 0
    %1430 = vmatprep.mubr.bf16.mxu0 0
    %1431 = vmatmul.mubr.bf16.gmra.mrb[0].mxu0 %v1234
    %v1432 = vpop.f32.mrb[0].mxu0
    %v1433 = vadd.f32 %v1380, %v1432
    %v1434 = vpop.f32.mrb[0].mxu0
    %v1435 = vadd.f32 %v1382, %v1434
    %v1436 = vpop.f32.mrb[0].mxu0
    %v1437 = vadd.f32 %v1384, %v1436
    %v1438 = vpop.f32.mrb[0].mxu0
    %v1439 = vadd.f32 %v1386, %v1438
    %1440 = vmatprep.mubr.bf16.mxu0 0
    %1441 = vmatmul.mubr.bf16.gmra.mrb[0].mxu0 %v1237
    %v1442 = vpop.f32.mrb[0].mxu0
    %v1443 = vadd.f32 %v1390, %v1442
    %v1444 = vpop.f32.mrb[0].mxu0
    %v1445 = vadd.f32 %v1392, %v1444
    %v1446 = vpop.f32.mrb[0].mxu0
    %v1447 = vadd.f32 %v1394, %v1446
    %v1448 = vpop.f32.mrb[0].mxu0
    %v1449 = vadd.f32 %v1396, %v1448
    %1450 = vdwg.mxu0
    %v1451 = vmax.f32 %v1327, 0.0
    %v1452 = vmax.f32 %v1329, 0.0
    %v1453 = vmax.f32 %v1433, 0.0
    %v1454 = vmax.f32 %v1435, 0.0
    %v1455 = vmax.f32 %v1331, 0.0
    %v1456 = vmax.f32 %v1333, 0.0
    %v1457 = vmax.f32 %v1437, 0.0
    %v1458 = vmax.f32 %v1439, 0.0
    %v1459 = vmax.f32 %v1337, 0.0
    %v1460 = vmax.f32 %v1339, 0.0
    %v1461 = vmax.f32 %v1443, 0.0
    %v1462 = vmax.f32 %v1445, 0.0
    %v1463 = vmax.f32 %v1341, 0.0
    %v1464 = vmax.f32 %v1343, 0.0
    %v1465 = vmax.f32 %v1447, 0.0
    %v1466 = vmax.f32 %v1449, 0.0
    %1467 = vrot.lane.b32.xlu0 %v1451, 17
    %v1468 = vpop.permute.xlu0 %1467
    %1469 = vrot.lane.b32.xlu0 %v1455, 17
    %v1470 = vpop.permute.xlu0 %1469
    %1471 = vrot.lane.b32.xlu0 %v1459, 17
    %v1472 = vpop.permute.xlu0 %1471
    %1473 = vrot.lane.b32.xlu0 %v1463, 17
    %v1474 = vpop.permute.xlu0 %1473
    %1475 = vrot.lane.b32.xlu0 %v1452, 17
    %v1476 = vpop.permute.xlu0 %1475
    %1477 = vrot.lane.b32.xlu0 %v1456, 17
    %v1478 = vpop.permute.xlu0 %1477
    %1479 = vrot.lane.b32.xlu0 %v1460, 17
    %v1480 = vpop.permute.xlu0 %1479
    %1481 = vrot.lane.b32.xlu0 %v1464, 17
    %v1482 = vpop.permute.xlu0 %1481
    %1483 = vrot.lane.b32.xlu0 %v1453, 17
    %v1484 = vpop.permute.xlu0 %1483
    %1485 = vrot.lane.b32.xlu0 %v1457, 17
    %v1486 = vpop.permute.xlu0 %1485
    %1487 = vrot.lane.b32.xlu0 %v1461, 17
    %v1488 = vpop.permute.xlu0 %1487
    %1489 = vrot.lane.b32.xlu0 %v1465, 17
    %v1490 = vpop.permute.xlu0 %1489
    %1491 = vrot.lane.b32.xlu0 %v1454, 17
    %v1492 = vpop.permute.xlu0 %1491
    %1493 = vrot.lane.b32.xlu0 %v1458, 17
    %v1494 = vpop.permute.xlu0 %1493
    %1495 = vrot.lane.b32.xlu0 %v1462, 17
    %v1496 = vpop.permute.xlu0 %1495
    %1497 = vrot.lane.b32.xlu0 %v1466, 17
    %v1498 = vpop.permute.xlu0 %1497
    %v1499 = vsel %vm405, %v1484, %v1492
    %v1500 = vsel %vm405, %v1486, %v1494
    %v1501 = vsel %vm405, %v1488, %v1496
    %v1502 = vsel %vm405, %v1490, %v1498
    %v1503 = vsel %vm405, %v1476, %v1484
    %v1504 = vsel %vm405, %v1478, %v1486
    %v1505 = vsel %vm405, %v1480, %v1488
    %v1506 = vsel %vm405, %v1482, %v1490
    %v1507 = vsel %vm405, %v1468, %v1476
    %v1508 = vsel %vm405, %v1470, %v1478
    %v1509 = vsel %vm405, %v1472, %v1480
    %v1510 = vsel %vm405, %v1474, %v1482
    %v1511 = vsel %vm405, %v1492, %v1468
    %v1512 = vsel %vm405, %v1494, %v1470
    %v1513 = vsel %vm405, %v1496, %v1472
    %v1514 = vsel %vm405, %v1498, %v1474
    %v1515 = vmul.f32 %v1511, %v426
    %v1516 = vmul.f32 %v1507, %v430
    %v1517 = vmul.f32 %v1503, %v434
    %v1518 = vmul.f32 %v1499, %v438
    %v1519 = vmul.f32 %v1512, %v426
    %v1520 = vmul.f32 %v1508, %v430
    %v1521 = vmul.f32 %v1504, %v434
    %v1522 = vmul.f32 %v1500, %v438
    %v1523 = vmul.f32 %v1513, %v426
    %v1524 = vmul.f32 %v1509, %v430
    %v1525 = vmul.f32 %v1505, %v434
    %v1526 = vmul.f32 %v1501, %v438
    %v1527 = vmul.f32 %v1514, %v426
    %v1528 = vmul.f32 %v1510, %v430
    %v1529 = vmul.f32 %v1506, %v434
    %v1530 = vmul.f32 %v1502, %v438
    %v1531 = vpack.c.bf16 %v1519, %v1515
    %v1532 = vpack.c.bf16 %v1520, %v1516
    %v1533 = vpack.c.bf16 %v1521, %v1517
    %v1534 = vpack.c.bf16 %v1522, %v1518
    %v1535 = vpack.c.bf16 %v1527, %v1523
    %v1536 = vpack.c.bf16 %v1528, %v1524
    %v1537 = vpack.c.bf16 %v1529, %v1525
    %v1538 = vpack.c.bf16 %v1530, %v1526
    %1539 = vrot.lane.b32.xlu0 %v1451, 16
    %v1540 = vpop.permute.xlu0 %1539
    %1541 = vrot.lane.b32.xlu0 %v1455, 16
    %v1542 = vpop.permute.xlu0 %1541
    %1543 = vrot.lane.b32.xlu0 %v1459, 16
    %v1544 = vpop.permute.xlu0 %1543
    %1545 = vrot.lane.b32.xlu0 %v1463, 16
    %v1546 = vpop.permute.xlu0 %1545
    %1547 = vrot.lane.b32.xlu0 %v1452, 16
    %v1548 = vpop.permute.xlu0 %1547
    %1549 = vrot.lane.b32.xlu0 %v1456, 16
    %v1550 = vpop.permute.xlu0 %1549
    %1551 = vrot.lane.b32.xlu0 %v1460, 16
    %v1552 = vpop.permute.xlu0 %1551
    %1553 = vrot.lane.b32.xlu0 %v1464, 16
    %v1554 = vpop.permute.xlu0 %1553
    %1555 = vrot.lane.b32.xlu0 %v1453, 16
    %v1556 = vpop.permute.xlu0 %1555
    %1557 = vrot.lane.b32.xlu0 %v1457, 16
    %v1558 = vpop.permute.xlu0 %1557
    %1559 = vrot.lane.b32.xlu0 %v1461, 16
    %v1560 = vpop.permute.xlu0 %1559
    %1561 = vrot.lane.b32.xlu0 %v1465, 16
    %v1562 = vpop.permute.xlu0 %1561
    %1563 = vrot.lane.b32.xlu0 %v1454, 16
    %v1564 = vpop.permute.xlu0 %1563
    %1565 = vrot.lane.b32.xlu0 %v1458, 16
    %v1566 = vpop.permute.xlu0 %1565
    %1567 = vrot.lane.b32.xlu0 %v1462, 16
    %v1568 = vpop.permute.xlu0 %1567
    %1569 = vrot.lane.b32.xlu0 %v1466, 16
    %v1570 = vpop.permute.xlu0 %1569
    %v1571 = vsel %vm499, %v1556, %v1564
    %v1572 = vsel %vm499, %v1558, %v1566
    %v1573 = vsel %vm499, %v1560, %v1568
    %v1574 = vsel %vm499, %v1562, %v1570
    %v1575 = vsel %vm499, %v1548, %v1556
    %v1576 = vsel %vm499, %v1550, %v1558
    %v1577 = vsel %vm499, %v1552, %v1560
    %v1578 = vsel %vm499, %v1554, %v1562
    %v1579 = vsel %vm499, %v1540, %v1548
    %v1580 = vsel %vm499, %v1542, %v1550
    %v1581 = vsel %vm499, %v1544, %v1552
    %v1582 = vsel %vm499, %v1546, %v1554
    %v1583 = vsel %vm499, %v1564, %v1540
    %v1584 = vsel %vm499, %v1566, %v1542
    %v1585 = vsel %vm499, %v1568, %v1544
    %v1586 = vsel %vm499, %v1570, %v1546
    %v1587 = vmul.f32 %v1583, %v520
    %v1588 = vmul.f32 %v1579, %v524
    %v1589 = vmul.f32 %v1575, %v528
    %v1590 = vmul.f32 %v1571, %v532
    %v1591 = vmul.f32 %v1584, %v520
    %v1592 = vmul.f32 %v1580, %v524
    %v1593 = vmul.f32 %v1576, %v528
    %v1594 = vmul.f32 %v1572, %v532
    %v1595 = vmul.f32 %v1585, %v520
    %v1596 = vmul.f32 %v1581, %v524
    %v1597 = vmul.f32 %v1577, %v528
    %v1598 = vmul.f32 %v1573, %v532
    %v1599 = vmul.f32 %v1586, %v520
    %v1600 = vmul.f32 %v1582, %v524
    %v1601 = vmul.f32 %v1578, %v528
    %v1602 = vmul.f32 %v1574, %v532
    %v1603 = vpack.c.bf16 %v1591, %v1587
    %v1604 = vpack.c.bf16 %v1592, %v1588
    %v1605 = vpack.c.bf16 %v1593, %v1589
    %v1606 = vpack.c.bf16 %v1594, %v1590
    %v1607 = vpack.c.bf16 %v1599, %v1595
    %v1608 = vpack.c.bf16 %v1600, %v1596
    %v1609 = vpack.c.bf16 %v1601, %v1597
    %v1610 = vpack.c.bf16 %v1602, %v1598
    %1611 = vrot.lane.b32.xlu0 %v1451, 15
    %v1612 = vpop.permute.xlu0 %1611
    %1613 = vrot.lane.b32.xlu0 %v1455, 15
    %v1614 = vpop.permute.xlu0 %1613
    %1615 = vrot.lane.b32.xlu0 %v1459, 15
    %v1616 = vpop.permute.xlu0 %1615
    %1617 = vrot.lane.b32.xlu0 %v1463, 15
    %v1618 = vpop.permute.xlu0 %1617
    %1619 = vrot.lane.b32.xlu0 %v1452, 15
    %v1620 = vpop.permute.xlu0 %1619
    %1621 = vrot.lane.b32.xlu0 %v1456, 15
    %v1622 = vpop.permute.xlu0 %1621
    %1623 = vrot.lane.b32.xlu0 %v1460, 15
    %v1624 = vpop.permute.xlu0 %1623
    %1625 = vrot.lane.b32.xlu0 %v1464, 15
    %v1626 = vpop.permute.xlu0 %1625
    %1627 = vrot.lane.b32.xlu0 %v1453, 15
    %v1628 = vpop.permute.xlu0 %1627
    %1629 = vrot.lane.b32.xlu0 %v1457, 15
    %v1630 = vpop.permute.xlu0 %1629
    %1631 = vrot.lane.b32.xlu0 %v1461, 15
    %v1632 = vpop.permute.xlu0 %1631
    %1633 = vrot.lane.b32.xlu0 %v1465, 15
    %v1634 = vpop.permute.xlu0 %1633
    %1635 = vrot.lane.b32.xlu0 %v1454, 15
    %v1636 = vpop.permute.xlu0 %1635
    %1637 = vrot.lane.b32.xlu0 %v1458, 15
    %v1638 = vpop.permute.xlu0 %1637
    %1639 = vrot.lane.b32.xlu0 %v1462, 15
    %v1640 = vpop.permute.xlu0 %1639
    %1641 = vrot.lane.b32.xlu0 %v1466, 15
    %v1642 = vpop.permute.xlu0 %1641
    %v1643 = vsel %vm593, %v1628, %v1636
    %v1644 = vsel %vm593, %v1630, %v1638
    %v1645 = vsel %vm593, %v1632, %v1640
    %v1646 = vsel %vm593, %v1634, %v1642
    %v1647 = vsel %vm593, %v1620, %v1628
    %v1648 = vsel %vm593, %v1622, %v1630
    %v1649 = vsel %vm593, %v1624, %v1632
    %v1650 = vsel %vm593, %v1626, %v1634
    %v1651 = vsel %vm593, %v1612, %v1620
    %v1652 = vsel %vm593, %v1614, %v1622
    %v1653 = vsel %vm593, %v1616, %v1624
    %v1654 = vsel %vm593, %v1618, %v1626
    %v1655 = vsel %vm593, %v1636, %v1612
    %v1656 = vsel %vm593, %v1638, %v1614
    %v1657 = vsel %vm593, %v1640, %v1616
    %v1658 = vsel %vm593, %v1642, %v1618
    %v1659 = vmul.f32 %v1655, %v614
    %v1660 = vmul.f32 %v1651, %v618
    %v1661 = vmul.f32 %v1647, %v622
    %v1662 = vmul.f32 %v1643, %v626
    %v1663 = vmul.f32 %v1656, %v614
    %v1664 = vmul.f32 %v1652, %v618
    %v1665 = vmul.f32 %v1648, %v622
    %v1666 = vmul.f32 %v1644, %v626
    %v1667 = vmul.f32 %v1657, %v614
    %v1668 = vmul.f32 %v1653, %v618
    %v1669 = vmul.f32 %v1649, %v622
    %v1670 = vmul.f32 %v1645, %v626
    %v1671 = vmul.f32 %v1658, %v614
    %v1672 = vmul.f32 %v1654, %v618
    %v1673 = vmul.f32 %v1650, %v622
    %v1674 = vmul.f32 %v1646, %v626
    %v1675 = vpack.c.bf16 %v1663, %v1659
    %v1676 = vpack.c.bf16 %v1664, %v1660
    %v1677 = vpack.c.bf16 %v1665, %v1661
    %v1678 = vpack.c.bf16 %v1666, %v1662
    %v1679 = vpack.c.bf16 %v1671, %v1667
    %v1680 = vpack.c.bf16 %v1672, %v1668
    %v1681 = vpack.c.bf16 %v1673, %v1669
    %v1682 = vpack.c.bf16 %v1674, %v1670
    %1683 = vrot.lane.b32.xlu0 %v1451, 1
    %v1684 = vpop.permute.xlu0 %1683
    %1685 = vrot.lane.b32.xlu0 %v1455, 1
    %v1686 = vpop.permute.xlu0 %1685
    %1687 = vrot.lane.b32.xlu0 %v1459, 1
    %v1688 = vpop.permute.xlu0 %1687
    %1689 = vrot.lane.b32.xlu0 %v1463, 1
    %v1690 = vpop.permute.xlu0 %1689
    %1691 = vrot.lane.b32.xlu0 %v1452, 1
    %v1692 = vpop.permute.xlu0 %1691
    %1693 = vrot.lane.b32.xlu0 %v1456, 1
    %v1694 = vpop.permute.xlu0 %1693
    %1695 = vrot.lane.b32.xlu0 %v1460, 1
    %v1696 = vpop.permute.xlu0 %1695
    %1697 = vrot.lane.b32.xlu0 %v1464, 1
    %v1698 = vpop.permute.xlu0 %1697
    %1699 = vrot.lane.b32.xlu0 %v1453, 1
    %v1700 = vpop.permute.xlu0 %1699
    %1701 = vrot.lane.b32.xlu0 %v1457, 1
    %v1702 = vpop.permute.xlu0 %1701
    %1703 = vrot.lane.b32.xlu0 %v1461, 1
    %v1704 = vpop.permute.xlu0 %1703
    %1705 = vrot.lane.b32.xlu0 %v1465, 1
    %v1706 = vpop.permute.xlu0 %1705
    %1707 = vrot.lane.b32.xlu0 %v1454, 1
    %v1708 = vpop.permute.xlu0 %1707
    %1709 = vrot.lane.b32.xlu0 %v1458, 1
    %v1710 = vpop.permute.xlu0 %1709
    %1711 = vrot.lane.b32.xlu0 %v1462, 1
    %v1712 = vpop.permute.xlu0 %1711
    %1713 = vrot.lane.b32.xlu0 %v1466, 1
    %v1714 = vpop.permute.xlu0 %1713
    %v1715 = vsel %vm687, %v1700, %v1708
    %v1716 = vsel %vm687, %v1702, %v1710
    %v1717 = vsel %vm687, %v1704, %v1712
    %v1718 = vsel %vm687, %v1706, %v1714
    %v1719 = vsel %vm687, %v1692, %v1700
    %v1720 = vsel %vm687, %v1694, %v1702
    %v1721 = vsel %vm687, %v1696, %v1704
    %v1722 = vsel %vm687, %v1698, %v1706
    %v1723 = vsel %vm687, %v1684, %v1692
    %v1724 = vsel %vm687, %v1686, %v1694
    %v1725 = vsel %vm687, %v1688, %v1696
    %v1726 = vsel %vm687, %v1690, %v1698
    %v1727 = vsel %vm687, %v1708, %v1684
    %v1728 = vsel %vm687, %v1710, %v1686
    %v1729 = vsel %vm687, %v1712, %v1688
    %v1730 = vsel %vm687, %v1714, %v1690
    %v1731 = vmul.f32 %v1727, %v708
    %v1732 = vmul.f32 %v1723, %v712
    %v1733 = vmul.f32 %v1719, %v716
    %v1734 = vmul.f32 %v1715, %v720
    %v1735 = vmul.f32 %v1728, %v708
    %v1736 = vmul.f32 %v1724, %v712
    %v1737 = vmul.f32 %v1720, %v716
    %v1738 = vmul.f32 %v1716, %v720
    %v1739 = vmul.f32 %v1729, %v708
    %v1740 = vmul.f32 %v1725, %v712
    %v1741 = vmul.f32 %v1721, %v716
    %v1742 = vmul.f32 %v1717, %v720
    %v1743 = vmul.f32 %v1730, %v708
    %v1744 = vmul.f32 %v1726, %v712
    %v1745 = vmul.f32 %v1722, %v716
    %v1746 = vmul.f32 %v1718, %v720
    %v1747 = vpack.c.bf16 %v1735, %v1731
    %v1748 = vpack.c.bf16 %v1736, %v1732
    %v1749 = vpack.c.bf16 %v1737, %v1733
    %v1750 = vpack.c.bf16 %v1738, %v1734
    %v1751 = vpack.c.bf16 %v1743, %v1739
    %v1752 = vpack.c.bf16 %v1744, %v1740
    %v1753 = vpack.c.bf16 %v1745, %v1741
    %v1754 = vpack.c.bf16 %v1746, %v1742
    %v1755 = vmul.f32 %v1451, %v753
    %v1756 = vmul.f32 %v1452, %v757
    %v1757 = vmul.f32 %v1453, %v761
    %v1758 = vmul.f32 %v1454, %v765
    %v1759 = vmul.f32 %v1455, %v753
    %v1760 = vmul.f32 %v1456, %v757
    %v1761 = vmul.f32 %v1457, %v761
    %v1762 = vmul.f32 %v1458, %v765
    %v1763 = vmul.f32 %v1459, %v753
    %v1764 = vmul.f32 %v1460, %v757
    %v1765 = vmul.f32 %v1461, %v761
    %v1766 = vmul.f32 %v1462, %v765
    %v1767 = vmul.f32 %v1463, %v753
    %v1768 = vmul.f32 %v1464, %v757
    %v1769 = vmul.f32 %v1465, %v761
    %v1770 = vmul.f32 %v1466, %v765
    %v1771 = vpack.c.bf16 %v1759, %v1755
    %v1772 = vpack.c.bf16 %v1760, %v1756
    %v1773 = vpack.c.bf16 %v1761, %v1757
    %v1774 = vpack.c.bf16 %v1762, %v1758
    %v1775 = vpack.c.bf16 %v1767, %v1763
    %v1776 = vpack.c.bf16 %v1768, %v1764
    %v1777 = vpack.c.bf16 %v1769, %v1765
    %v1778 = vpack.c.bf16 %v1770, %v1766
    %1779 = vrot.lane.b32.xlu0 %v1451, 127
    %v1780 = vpop.permute.xlu0 %1779
    %1781 = vrot.lane.b32.xlu0 %v1455, 127
    %v1782 = vpop.permute.xlu0 %1781
    %1783 = vrot.lane.b32.xlu0 %v1459, 127
    %v1784 = vpop.permute.xlu0 %1783
    %1785 = vrot.lane.b32.xlu0 %v1463, 127
    %v1786 = vpop.permute.xlu0 %1785
    %1787 = vrot.lane.b32.xlu0 %v1452, 127
    %v1788 = vpop.permute.xlu0 %1787
    %1789 = vrot.lane.b32.xlu0 %v1456, 127
    %v1790 = vpop.permute.xlu0 %1789
    %1791 = vrot.lane.b32.xlu0 %v1460, 127
    %v1792 = vpop.permute.xlu0 %1791
    %1793 = vrot.lane.b32.xlu0 %v1464, 127
    %v1794 = vpop.permute.xlu0 %1793
    %1795 = vrot.lane.b32.xlu0 %v1453, 127
    %v1796 = vpop.permute.xlu0 %1795
    %1797 = vrot.lane.b32.xlu0 %v1457, 127
    %v1798 = vpop.permute.xlu0 %1797
    %1799 = vrot.lane.b32.xlu0 %v1461, 127
    %v1800 = vpop.permute.xlu0 %1799
    %1801 = vrot.lane.b32.xlu0 %v1465, 127
    %v1802 = vpop.permute.xlu0 %1801
    %1803 = vrot.lane.b32.xlu0 %v1454, 127
    %v1804 = vpop.permute.xlu0 %1803
    %1805 = vrot.lane.b32.xlu0 %v1458, 127
    %v1806 = vpop.permute.xlu0 %1805
    %1807 = vrot.lane.b32.xlu0 %v1462, 127
    %v1808 = vpop.permute.xlu0 %1807
    %1809 = vrot.lane.b32.xlu0 %v1466, 127
    %v1810 = vpop.permute.xlu0 %1809
    %v1811 = vsel %vm826, %v1796, %v1804
    %v1812 = vsel %vm826, %v1798, %v1806
    %v1813 = vsel %vm826, %v1800, %v1808
    %v1814 = vsel %vm826, %v1802, %v1810
    %v1815 = vsel %vm826, %v1788, %v1796
    %v1816 = vsel %vm826, %v1790, %v1798
    %v1817 = vsel %vm826, %v1792, %v1800
    %v1818 = vsel %vm826, %v1794, %v1802
    %v1819 = vsel %vm826, %v1780, %v1788
    %v1820 = vsel %vm826, %v1782, %v1790
    %v1821 = vsel %vm826, %v1784, %v1792
    %v1822 = vsel %vm826, %v1786, %v1794
    %v1823 = vsel %vm826, %v1804, %v1780
    %v1824 = vsel %vm826, %v1806, %v1782
    %v1825 = vsel %vm826, %v1808, %v1784
    %v1826 = vsel %vm826, %v1810, %v1786
    %v1827 = vmul.f32 %v1819, %v847
    %v1828 = vmul.f32 %v1815, %v851
    %v1829 = vmul.f32 %v1811, %v855
    %v1830 = vmul.f32 %v1823, %v859
    %v1831 = vmul.f32 %v1820, %v847
    %v1832 = vmul.f32 %v1816, %v851
    %v1833 = vmul.f32 %v1812, %v855
    %v1834 = vmul.f32 %v1824, %v859
    %v1835 = vmul.f32 %v1821, %v847
    %v1836 = vmul.f32 %v1817, %v851
    %v1837 = vmul.f32 %v1813, %v855
    %v1838 = vmul.f32 %v1825, %v859
    %v1839 = vmul.f32 %v1822, %v847
    %v1840 = vmul.f32 %v1818, %v851
    %v1841 = vmul.f32 %v1814, %v855
    %v1842 = vmul.f32 %v1826, %v859
    %v1843 = vpack.c.bf16 %v1831, %v1827
    %v1844 = vpack.c.bf16 %v1832, %v1828
    %v1845 = vpack.c.bf16 %v1833, %v1829
    %v1846 = vpack.c.bf16 %v1834, %v1830
    %v1847 = vpack.c.bf16 %v1839, %v1835
    %v1848 = vpack.c.bf16 %v1840, %v1836
    %v1849 = vpack.c.bf16 %v1841, %v1837
    %v1850 = vpack.c.bf16 %v1842, %v1838
    %1851 = vrot.lane.b32.xlu0 %v1451, 113
    %v1852 = vpop.permute.xlu0 %1851
    %1853 = vrot.lane.b32.xlu0 %v1455, 113
    %v1854 = vpop.permute.xlu0 %1853
    %1855 = vrot.lane.b32.xlu0 %v1459, 113
    %v1856 = vpop.permute.xlu0 %1855
    %1857 = vrot.lane.b32.xlu0 %v1463, 113
    %v1858 = vpop.permute.xlu0 %1857
    %1859 = vrot.lane.b32.xlu0 %v1452, 113
    %v1860 = vpop.permute.xlu0 %1859
    %1861 = vrot.lane.b32.xlu0 %v1456, 113
    %v1862 = vpop.permute.xlu0 %1861
    %1863 = vrot.lane.b32.xlu0 %v1460, 113
    %v1864 = vpop.permute.xlu0 %1863
    %1865 = vrot.lane.b32.xlu0 %v1464, 113
    %v1866 = vpop.permute.xlu0 %1865
    %1867 = vrot.lane.b32.xlu0 %v1453, 113
    %v1868 = vpop.permute.xlu0 %1867
    %1869 = vrot.lane.b32.xlu0 %v1457, 113
    %v1870 = vpop.permute.xlu0 %1869
    %1871 = vrot.lane.b32.xlu0 %v1461, 113
    %v1872 = vpop.permute.xlu0 %1871
    %1873 = vrot.lane.b32.xlu0 %v1465, 113
    %v1874 = vpop.permute.xlu0 %1873
    %1875 = vrot.lane.b32.xlu0 %v1454, 113
    %v1876 = vpop.permute.xlu0 %1875
    %1877 = vrot.lane.b32.xlu0 %v1458, 113
    %v1878 = vpop.permute.xlu0 %1877
    %1879 = vrot.lane.b32.xlu0 %v1462, 113
    %v1880 = vpop.permute.xlu0 %1879
    %1881 = vrot.lane.b32.xlu0 %v1466, 113
    %v1882 = vpop.permute.xlu0 %1881
    %v1883 = vsel %vm920, %v1868, %v1876
    %v1884 = vsel %vm920, %v1870, %v1878
    %v1885 = vsel %vm920, %v1872, %v1880
    %v1886 = vsel %vm920, %v1874, %v1882
    %v1887 = vsel %vm920, %v1860, %v1868
    %v1888 = vsel %vm920, %v1862, %v1870
    %v1889 = vsel %vm920, %v1864, %v1872
    %v1890 = vsel %vm920, %v1866, %v1874
    %v1891 = vsel %vm920, %v1852, %v1860
    %v1892 = vsel %vm920, %v1854, %v1862
    %v1893 = vsel %vm920, %v1856, %v1864
    %v1894 = vsel %vm920, %v1858, %v1866
    %v1895 = vsel %vm920, %v1876, %v1852
    %v1896 = vsel %vm920, %v1878, %v1854
    %v1897 = vsel %vm920, %v1880, %v1856
    %v1898 = vsel %vm920, %v1882, %v1858
    %v1899 = vmul.f32 %v1891, %v941
    %v1900 = vmul.f32 %v1887, %v945
    %v1901 = vmul.f32 %v1883, %v949
    %v1902 = vmul.f32 %v1895, %v953
    %v1903 = vmul.f32 %v1892, %v941
    %v1904 = vmul.f32 %v1888, %v945
    %v1905 = vmul.f32 %v1884, %v949
    %v1906 = vmul.f32 %v1896, %v953
    %v1907 = vmul.f32 %v1893, %v941
    %v1908 = vmul.f32 %v1889, %v945
    %v1909 = vmul.f32 %v1885, %v949
    %v1910 = vmul.f32 %v1897, %v953
    %v1911 = vmul.f32 %v1894, %v941
    %v1912 = vmul.f32 %v1890, %v945
    %v1913 = vmul.f32 %v1886, %v949
    %v1914 = vmul.f32 %v1898, %v953
    %v1915 = vpack.c.bf16 %v1903, %v1899
    %v1916 = vpack.c.bf16 %v1904, %v1900
    %v1917 = vpack.c.bf16 %v1905, %v1901
    %v1918 = vpack.c.bf16 %v1906, %v1902
    %v1919 = vpack.c.bf16 %v1911, %v1907
    %v1920 = vpack.c.bf16 %v1912, %v1908
    %v1921 = vpack.c.bf16 %v1913, %v1909
    %v1922 = vpack.c.bf16 %v1914, %v1910
    %1923 = vrot.lane.b32.xlu0 %v1451, 112
    %v1924 = vpop.permute.xlu0 %1923
    %1925 = vrot.lane.b32.xlu0 %v1455, 112
    %v1926 = vpop.permute.xlu0 %1925
    %1927 = vrot.lane.b32.xlu0 %v1459, 112
    %v1928 = vpop.permute.xlu0 %1927
    %1929 = vrot.lane.b32.xlu0 %v1463, 112
    %v1930 = vpop.permute.xlu0 %1929
    %1931 = vrot.lane.b32.xlu0 %v1452, 112
    %v1932 = vpop.permute.xlu0 %1931
    %1933 = vrot.lane.b32.xlu0 %v1456, 112
    %v1934 = vpop.permute.xlu0 %1933
    %1935 = vrot.lane.b32.xlu0 %v1460, 112
    %v1936 = vpop.permute.xlu0 %1935
    %1937 = vrot.lane.b32.xlu0 %v1464, 112
    %v1938 = vpop.permute.xlu0 %1937
    %1939 = vrot.lane.b32.xlu0 %v1453, 112
    %v1940 = vpop.permute.xlu0 %1939
    %1941 = vrot.lane.b32.xlu0 %v1457, 112
    %v1942 = vpop.permute.xlu0 %1941
    %1943 = vrot.lane.b32.xlu0 %v1461, 112
    %v1944 = vpop.permute.xlu0 %1943
    %1945 = vrot.lane.b32.xlu0 %v1465, 112
    %v1946 = vpop.permute.xlu0 %1945
    %1947 = vrot.lane.b32.xlu0 %v1454, 112
    %v1948 = vpop.permute.xlu0 %1947
    %1949 = vrot.lane.b32.xlu0 %v1458, 112
    %v1950 = vpop.permute.xlu0 %1949
    %1951 = vrot.lane.b32.xlu0 %v1462, 112
    %v1952 = vpop.permute.xlu0 %1951
    %1953 = vrot.lane.b32.xlu0 %v1466, 112
    %v1954 = vpop.permute.xlu0 %1953
    %v1955 = vsel %vm1014, %v1940, %v1948
    %v1956 = vsel %vm1014, %v1942, %v1950
    %v1957 = vsel %vm1014, %v1944, %v1952
    %v1958 = vsel %vm1014, %v1946, %v1954
    %v1959 = vsel %vm1014, %v1932, %v1940
    %v1960 = vsel %vm1014, %v1934, %v1942
    %v1961 = vsel %vm1014, %v1936, %v1944
    %v1962 = vsel %vm1014, %v1938, %v1946
    %v1963 = vsel %vm1014, %v1924, %v1932
    %v1964 = vsel %vm1014, %v1926, %v1934
    %v1965 = vsel %vm1014, %v1928, %v1936
    %v1966 = vsel %vm1014, %v1930, %v1938
    %v1967 = vsel %vm1014, %v1948, %v1924
    %v1968 = vsel %vm1014, %v1950, %v1926
    %v1969 = vsel %vm1014, %v1952, %v1928
    %v1970 = vsel %vm1014, %v1954, %v1930
    %v1971 = vmul.f32 %v1963, %v1035
    %v1972 = vmul.f32 %v1959, %v1039
    %v1973 = vmul.f32 %v1955, %v1043
    %v1974 = vmul.f32 %v1967, %v1047
    %v1975 = vmul.f32 %v1964, %v1035
    %v1976 = vmul.f32 %v1960, %v1039
    %v1977 = vmul.f32 %v1956, %v1043
    %v1978 = vmul.f32 %v1968, %v1047
    %v1979 = vmul.f32 %v1965, %v1035
    %v1980 = vmul.f32 %v1961, %v1039
    %v1981 = vmul.f32 %v1957, %v1043
    %v1982 = vmul.f32 %v1969, %v1047
    %v1983 = vmul.f32 %v1966, %v1035
    %v1984 = vmul.f32 %v1962, %v1039
    %v1985 = vmul.f32 %v1958, %v1043
    %v1986 = vmul.f32 %v1970, %v1047
    %v1987 = vpack.c.bf16 %v1975, %v1971
    %v1988 = vpack.c.bf16 %v1976, %v1972
    %v1989 = vpack.c.bf16 %v1977, %v1973
    %v1990 = vpack.c.bf16 %v1978, %v1974
    %v1991 = vpack.c.bf16 %v1983, %v1979
    %v1992 = vpack.c.bf16 %v1984, %v1980
    %v1993 = vpack.c.bf16 %v1985, %v1981
    %v1994 = vpack.c.bf16 %v1986, %v1982
    %1995 = vrot.lane.b32.xlu0 %v1451, 111
    %v1996 = vpop.permute.xlu0 %1995
    %1997 = vrot.lane.b32.xlu0 %v1455, 111
    %v1998 = vpop.permute.xlu0 %1997
    %1999 = vrot.lane.b32.xlu0 %v1459, 111
    %v2000 = vpop.permute.xlu0 %1999
    %2001 = vrot.lane.b32.xlu0 %v1463, 111
    %v2002 = vpop.permute.xlu0 %2001
    %2003 = vrot.lane.b32.xlu0 %v1452, 111
    %v2004 = vpop.permute.xlu0 %2003
    %2005 = vrot.lane.b32.xlu0 %v1456, 111
    %v2006 = vpop.permute.xlu0 %2005
    %2007 = vrot.lane.b32.xlu0 %v1460, 111
    %v2008 = vpop.permute.xlu0 %2007
    %2009 = vrot.lane.b32.xlu0 %v1464, 111
    %v2010 = vpop.permute.xlu0 %2009
    %2011 = vrot.lane.b32.xlu0 %v1453, 111
    %v2012 = vpop.permute.xlu0 %2011
    %2013 = vrot.lane.b32.xlu0 %v1457, 111
    %v2014 = vpop.permute.xlu0 %2013
    %2015 = vrot.lane.b32.xlu0 %v1461, 111
    %v2016 = vpop.permute.xlu0 %2015
    %2017 = vrot.lane.b32.xlu0 %v1465, 111
    %v2018 = vpop.permute.xlu0 %2017
    %2019 = vrot.lane.b32.xlu0 %v1454, 111
    %v2020 = vpop.permute.xlu0 %2019
    %2021 = vrot.lane.b32.xlu0 %v1458, 111
    %v2022 = vpop.permute.xlu0 %2021
    %2023 = vrot.lane.b32.xlu0 %v1462, 111
    %v2024 = vpop.permute.xlu0 %2023
    %2025 = vrot.lane.b32.xlu0 %v1466, 111
    %v2026 = vpop.permute.xlu0 %2025
    %v2027 = vsel %vm1108, %v2012, %v2020
    %v2028 = vsel %vm1108, %v2014, %v2022
    %v2029 = vsel %vm1108, %v2016, %v2024
    %v2030 = vsel %vm1108, %v2018, %v2026
    %v2031 = vsel %vm1108, %v2004, %v2012
    %v2032 = vsel %vm1108, %v2006, %v2014
    %v2033 = vsel %vm1108, %v2008, %v2016
    %v2034 = vsel %vm1108, %v2010, %v2018
    %v2035 = vsel %vm1108, %v1996, %v2004
    %v2036 = vsel %vm1108, %v1998, %v2006
    %v2037 = vsel %vm1108, %v2000, %v2008
    %v2038 = vsel %vm1108, %v2002, %v2010
    %v2039 = vsel %vm1108, %v2020, %v1996
    %v2040 = vsel %vm1108, %v2022, %v1998
    %v2041 = vsel %vm1108, %v2024, %v2000
    %v2042 = vsel %vm1108, %v2026, %v2002
    %v2043 = vmul.f32 %v2035, %v1129
    %v2044 = vmul.f32 %v2031, %v1133
    %v2045 = vmul.f32 %v2027, %v1137
    %v2046 = vmul.f32 %v2039, %v1141
    %v2047 = vmul.f32 %v2036, %v1129
    %v2048 = vmul.f32 %v2032, %v1133
    %v2049 = vmul.f32 %v2028, %v1137
    %v2050 = vmul.f32 %v2040, %v1141
    %v2051 = vmul.f32 %v2037, %v1129
    %v2052 = vmul.f32 %v2033, %v1133
    %v2053 = vmul.f32 %v2029, %v1137
    %v2054 = vmul.f32 %v2041, %v1141
    %v2055 = vmul.f32 %v2038, %v1129
    %v2056 = vmul.f32 %v2034, %v1133
    %v2057 = vmul.f32 %v2030, %v1137
    %v2058 = vmul.f32 %v2042, %v1141
    %v2059 = vpack.c.bf16 %v2047, %v2043
    %v2060 = vpack.c.bf16 %v2048, %v2044
    %v2061 = vpack.c.bf16 %v2049, %v2045
    %v2062 = vpack.c.bf16 %v2050, %v2046
    %v2063 = vpack.c.bf16 %v2055, %v2051
    %v2064 = vpack.c.bf16 %v2056, %v2052
    %v2065 = vpack.c.bf16 %v2057, %v2053
    %v2066 = vpack.c.bf16 %v2058, %v2054
    %v2067 = vld [vmem:[%s8] sm:$0xff]
    %v2068 = vld [vmem:[%s8 + $0x8] sm:$0xf]
    %v2069 = vld [vmem:[%s8 + $0xc] sm:$0xff]
    %v2070 = vld [vmem:[%s8 + $0x14] sm:$0xf]
    %v2071 = vld [vmem:[%s8 + $0x18] sm:$0xff]
    %v2072 = vld [vmem:[%s8 + $0x20] sm:$0xf]
    %v2073 = vld [vmem:[%s8 + $0x24] sm:$0xff]
    %v2074 = vld [vmem:[%s8 + $0x2c] sm:$0xf]
    %v2075 = vld [vmem:[%s9] sm:$0xff]
    %v2076 = vld [vmem:[%s9 + $0x8] sm:$0xff]
    %v2077 = vld [vmem:[%s9 + $0x10] sm:$0xff]
    %v2078 = vld [vmem:[%s9 + $0x18] sm:$0xff]
    %2080 = vset.pattern.permute.xlu0 0
    %2081 = vperm.xlu0 %2080, %v2075
    %v2082 = vpop.permute.xlu0 %2081
    %2085 = vset.pattern.permute.xlu0 0
    %2086 = vperm.xlu0 %2085, %v2076
    %v2087 = vpop.permute.xlu0 %2086
    %2090 = vset.pattern.permute.xlu0 0
    %2091 = vperm.xlu0 %2090, %v2077
    %v2092 = vpop.permute.xlu0 %2091
    %2095 = vset.pattern.permute.xlu0 0
    %2096 = vperm.xlu0 %2095, %v2078
    %v2097 = vpop.permute.xlu0 %2096
    %v2107 = vunpack.c.l.b16 %v2067
    %v2108 = vunpack.c.h.b16 %v2067
    %v2109 = vunpack.c.l.b16 %v2068
    %v2110 = vunpack.c.l.b16 %v2069
    %v2111 = vunpack.c.h.b16 %v2069
    %v2112 = vunpack.c.l.b16 %v2070
    %v2113 = vunpack.c.l.b16 %v2071
    %v2114 = vunpack.c.h.b16 %v2071
    %v2115 = vunpack.c.l.b16 %v2072
    %v2116 = vunpack.c.l.b16 %v2073
    %v2117 = vunpack.c.h.b16 %v2073
    %v2118 = vunpack.c.l.b16 %v2074
    %v2119 = vpack.c.b16 %v2110, %v2107
    %v2120 = vpack.c.b16 %v2111, %v2108
    %v2121 = vpack.c.b16 %v2112, %v2109
    %v2122 = vpack.c.b16 %v2116, %v2113
    %v2123 = vpack.c.b16 %v2117, %v2114
    %v2124 = vpack.c.b16 %v2118, %v2115
    %v2130 = vsel %vm1232, %v2121, 0
    %v2133 = vsel %vm1232, %v2124, 0
    %2135 = vmatprep.subr.bf16.mxu0 %v1532
    %2136 = vmatpush1.bf16.msra.mxu0 %v1531
    %2137 = vmatprep.subr.bf16.mxu0 %v1536
    %2138 = vmatpush1.bf16.msra.mxu0 %v1535
    %2139 = vmatprep.subr.bf16.mxu0 %v1604
    %2140 = vmatpush1.bf16.msra.mxu0 %v1603
    %2141 = vmatprep.subr.bf16.mxu0 %v1608
    %2142 = vmatpush1.bf16.msra.mxu0 %v1607
    %2143 = vmatprep.subr.bf16.mxu0 %v1676
    %2144 = vmatpush1.bf16.msra.mxu0 %v1675
    %2145 = vmatprep.subr.bf16.mxu0 %v1680
    %2146 = vmatpush1.bf16.msra.mxu0 %v1679
    %2147 = vmatprep.subr.bf16.mxu0 %v1748
    %2148 = vmatpush1.bf16.msra.mxu0 %v1747
    %2149 = vmatprep.subr.bf16.mxu0 %v1752
    %2150 = vmatpush1.bf16.msra.mxu0 %v1751
    %2151 = vmatprep.subr.bf16.mxu0 %v1772
    %2152 = vmatpush1.bf16.msra.mxu0 %v1771
    %2153 = vmatprep.subr.bf16.mxu0 %v1776
    %2154 = vmatpush1.bf16.msra.mxu0 %v1775
    %2155 = vmatprep.subr.bf16.mxu0 %v1844
    %2156 = vmatpush1.bf16.msra.mxu0 %v1843
    %2157 = vmatprep.subr.bf16.mxu0 %v1848
    %2158 = vmatpush1.bf16.msra.mxu0 %v1847
    %2159 = vmatprep.subr.bf16.mxu0 %v1916
    %2160 = vmatpush1.bf16.msra.mxu0 %v1915
    %2161 = vmatprep.subr.bf16.mxu0 %v1920
    %2162 = vmatpush1.bf16.msra.mxu0 %v1919
    %2163 = vmatprep.subr.bf16.mxu0 %v1988
    %2164 = vmatpush1.bf16.msra.mxu0 %v1987
    %2165 = vmatprep.subr.bf16.mxu0 %v1992
    %2166 = vmatpush1.bf16.msra.mxu0 %v1991
    %2167 = vmatprep.mubr.bf16.mxu0 %v2120
    %2168 = vmatmul.mubr.bf16.gmra.mrb[0].mxu0 %v2119
    %v2169 = vpop.f32.mrb[0].mxu0
    %v2170 = vadd.f32 %v2082, %v2169
    %v2171 = vpop.f32.mrb[0].mxu0
    %v2172 = vadd.f32 %v2082, %v2171
    %v2173 = vpop.f32.mrb[0].mxu0
    %v2174 = vadd.f32 %v2087, %v2173
    %v2175 = vpop.f32.mrb[0].mxu0
    %v2176 = vadd.f32 %v2087, %v2175
    %2177 = vmatprep.mubr.bf16.mxu0 %v2123
    %2178 = vmatmul.mubr.bf16.gmra.mrb[0].mxu0 %v2122
    %v2179 = vpop.f32.mrb[0].mxu0
    %v2180 = vadd.f32 %v2092, %v2179
    %v2181 = vpop.f32.mrb[0].mxu0
    %v2182 = vadd.f32 %v2092, %v2181
    %v2183 = vpop.f32.mrb[0].mxu0
    %v2184 = vadd.f32 %v2097, %v2183
    %v2185 = vpop.f32.mrb[0].mxu0
    %v2186 = vadd.f32 %v2097, %v2185
    %2187 = vdwg.mxu0
    %2188 = vmatprep.subr.bf16.mxu0 %v2060
    %2189 = vmatpush1.bf16.msra.mxu0 %v2059
    %2190 = vmatprep.subr.bf16.mxu0 %v2064
    %2191 = vmatpush1.bf16.msra.mxu0 %v2063
    %2192 = vmatprep.subr.bf16.mxu0 0
    %2193 = vmatpush1.bf16.msra.mxu0 0
    %2194 = vmatprep.subr.bf16.mxu0 0
    %2195 = vmatpush1.bf16.msra.mxu0 0
    %2196 = vmatprep.subr.bf16.mxu0 0
    %2197 = vmatpush1.bf16.msra.mxu0 0
    %2198 = vmatprep.subr.bf16.mxu0 0
    %2199 = vmatpush1.bf16.msra.mxu0 0
    %2200 = vmatprep.subr.bf16.mxu0 0
    %2201 = vmatpush1.bf16.msra.mxu0 0
    %2202 = vmatprep.subr.bf16.mxu0 0
    %2203 = vmatpush1.bf16.msra.mxu0 0
    %2204 = vmatprep.subr.bf16.mxu0 0
    %2205 = vmatpush1.bf16.msra.mxu0 0
    %2206 = vmatprep.subr.bf16.mxu0 0
    %2207 = vmatpush1.bf16.msra.mxu0 0
    %2208 = vmatprep.subr.bf16.mxu0 0
    %2209 = vmatpush1.bf16.msra.mxu0 0
    %2210 = vmatprep.subr.bf16.mxu0 0
    %2211 = vmatpush1.bf16.msra.mxu0 0
    %2212 = vmatprep.subr.bf16.mxu0 0
    %2213 = vmatpush1.bf16.msra.mxu0 0
    %2214 = vmatprep.subr.bf16.mxu0 0
    %2215 = vmatpush1.bf16.msra.mxu0 0
    %2216 = vmatprep.subr.bf16.mxu0 0
    %2217 = vmatpush1.bf16.msra.mxu0 0
    %2218 = vmatprep.subr.bf16.mxu0 0
    %2219 = vmatpush1.bf16.msra.mxu0 0
    %2220 = vmatprep.mubr.bf16.mxu0 0
    %2221 = vmatmul.mubr.bf16.gmra.mrb[0].mxu0 %v2130
    %v2222 = vpop.f32.mrb[0].mxu0
    %v2223 = vadd.f32 %v2170, %v2222
    %v2224 = vpop.f32.mrb[0].mxu0
    %v2225 = vadd.f32 %v2172, %v2224
    %v2226 = vpop.f32.mrb[0].mxu0
    %v2227 = vadd.f32 %v2174, %v2226
    %v2228 = vpop.f32.mrb[0].mxu0
    %v2229 = vadd.f32 %v2176, %v2228
    %2230 = vmatprep.mubr.bf16.mxu0 0
    %2231 = vmatmul.mubr.bf16.gmra.mrb[0].mxu0 %v2133
    %v2232 = vpop.f32.mrb[0].mxu0
    %v2233 = vadd.f32 %v2180, %v2232
    %v2234 = vpop.f32.mrb[0].mxu0
    %v2235 = vadd.f32 %v2182, %v2234
    %v2236 = vpop.f32.mrb[0].mxu0
    %v2237 = vadd.f32 %v2184, %v2236
    %v2238 = vpop.f32.mrb[0].mxu0
    %v2239 = vadd.f32 %v2186, %v2238
    %2240 = vdwg.mxu0
    %2241 = vmatprep.subr.bf16.mxu0 %v1534
    %2242 = vmatpush1.bf16.msra.mxu0 %v1533
    %2243 = vmatprep.subr.bf16.mxu0 %v1538
    %2244 = vmatpush1.bf16.msra.mxu0 %v1537
    %2245 = vmatprep.subr.bf16.mxu0 %v1606
    %2246 = vmatpush1.bf16.msra.mxu0 %v1605
    %2247 = vmatprep.subr.bf16.mxu0 %v1610
    %2248 = vmatpush1.bf16.msra.mxu0 %v1609
    %2249 = vmatprep.subr.bf16.mxu0 %v1678
    %2250 = vmatpush1.bf16.msra.mxu0 %v1677
    %2251 = vmatprep.subr.bf16.mxu0 %v1682
    %2252 = vmatpush1.bf16.msra.mxu0 %v1681
    %2253 = vmatprep.subr.bf16.mxu0 %v1750
    %2254 = vmatpush1.bf16.msra.mxu0 %v1749
    %2255 = vmatprep.subr.bf16.mxu0 %v1754
    %2256 = vmatpush1.bf16.msra.mxu0 %v1753
    %2257 = vmatprep.subr.bf16.mxu0 %v1774
    %2258 = vmatpush1.bf16.msra.mxu0 %v1773
    %2259 = vmatprep.subr.bf16.mxu0 %v1778
    %2260 = vmatpush1.bf16.msra.mxu0 %v1777
    %2261 = vmatprep.subr.bf16.mxu0 %v1846
    %2262 = vmatpush1.bf16.msra.mxu0 %v1845
    %2263 = vmatprep.subr.bf16.mxu0 %v1850
    %2264 = vmatpush1.bf16.msra.mxu0 %v1849
    %2265 = vmatprep.subr.bf16.mxu0 %v1918
    %2266 = vmatpush1.bf16.msra.mxu0 %v1917
    %2267 = vmatprep.subr.bf16.mxu0 %v1922
    %2268 = vmatpush1.bf16.msra.mxu0 %v1921
    %2269 = vmatprep.subr.bf16.mxu0 %v1990
    %2270 = vmatpush1.bf16.msra.mxu0 %v1989
    %2271 = vmatprep.subr.bf16.mxu0 %v1994
    %2272 = vmatpush1.bf16.msra.mxu0 %v1993
    %2273 = vmatprep.mubr.bf16.mxu0 %v2120
    %2274 = vmatmul.mubr.bf16.gmra.mrb[0].mxu0 %v2119
    %v2275 = vpop.f32.mrb[0].mxu0
    %v2276 = vadd.f32 %v2082, %v2275
    %v2277 = vpop.f32.mrb[0].mxu0
    %v2278 = vadd.f32 %v2082, %v2277
    %v2279 = vpop.f32.mrb[0].mxu0
    %v2280 = vadd.f32 %v2087, %v2279
    %v2281 = vpop.f32.mrb[0].mxu0
    %v2282 = vadd.f32 %v2087, %v2281
    %2283 = vmatprep.mubr.bf16.mxu0 %v2123
    %2284 = vmatmul.mubr.bf16.gmra.mrb[0].mxu0 %v2122
    %v2285 = vpop.f32.mrb[0].mxu0
    %v2286 = vadd.f32 %v2092, %v2285
    %v2287 = vpop.f32.mrb[0].mxu0
    %v2288 = vadd.f32 %v2092, %v2287
    %v2289 = vpop.f32.mrb[0].mxu0
    %v2290 = vadd.f32 %v2097, %v2289
    %v2291 = vpop.f32.mrb[0].mxu0
    %v2292 = vadd.f32 %v2097, %v2291
    %2293 = vdwg.mxu0
    %2294 = vmatprep.subr.bf16.mxu0 %v2062
    %2295 = vmatpush1.bf16.msra.mxu0 %v2061
    %2296 = vmatprep.subr.bf16.mxu0 %v2066
    %2297 = vmatpush1.bf16.msra.mxu0 %v2065
    %2298 = vmatprep.subr.bf16.mxu0 0
    %2299 = vmatpush1.bf16.msra.mxu0 0
    %2300 = vmatprep.subr.bf16.mxu0 0
    %2301 = vmatpush1.bf16.msra.mxu0 0
    %2302 = vmatprep.subr.bf16.mxu0 0
    %2303 = vmatpush1.bf16.msra.mxu0 0
    %2304 = vmatprep.subr.bf16.mxu0 0
    %2305 = vmatpush1.bf16.msra.mxu0 0
    %2306 = vmatprep.subr.bf16.mxu0 0
    %2307 = vmatpush1.bf16.msra.mxu0 0
    %2308 = vmatprep.subr.bf16.mxu0 0
    %2309 = vmatpush1.bf16.msra.mxu0 0
    %2310 = vmatprep.subr.bf16.mxu0 0
    %2311 = vmatpush1.bf16.msra.mxu0 0
    %2312 = vmatprep.subr.bf16.mxu0 0
    %2313 = vmatpush1.bf16.msra.mxu0 0
    %2314 = vmatprep.subr.bf16.mxu0 0
    %2315 = vmatpush1.bf16.msra.mxu0 0
    %2316 = vmatprep.subr.bf16.mxu0 0
    %2317 = vmatpush1.bf16.msra.mxu0 0
    %2318 = vmatprep.subr.bf16.mxu0 0
    %2319 = vmatpush1.bf16.msra.mxu0 0
    %2320 = vmatprep.subr.bf16.mxu0 0
    %2321 = vmatpush1.bf16.msra.mxu0 0
    %2322 = vmatprep.subr.bf16.mxu0 0
    %2323 = vmatpush1.bf16.msra.mxu0 0
    %2324 = vmatprep.subr.bf16.mxu0 0
    %2325 = vmatpush1.bf16.msra.mxu0 0
    %2326 = vmatprep.mubr.bf16.mxu0 0
    %2327 = vmatmul.mubr.bf16.gmra.mrb[0].mxu0 %v2130
    %v2328 = vpop.f32.mrb[0].mxu0
    %v2329 = vadd.f32 %v2276, %v2328
    %v2330 = vpop.f32.mrb[0].mxu0
    %v2331 = vadd.f32 %v2278, %v2330
    %v2332 = vpop.f32.mrb[0].mxu0
    %v2333 = vadd.f32 %v2280, %v2332
    %v2334 = vpop.f32.mrb[0].mxu0
    %v2335 = vadd.f32 %v2282, %v2334
    %2336 = vmatprep.mubr.bf16.mxu0 0
    %2337 = vmatmul.mubr.bf16.gmra.mrb[0].mxu0 %v2133
    %v2338 = vpop.f32.mrb[0].mxu0
    %v2339 = vadd.f32 %v2286, %v2338
    %v2340 = vpop.f32.mrb[0].mxu0
    %v2341 = vadd.f32 %v2288, %v2340
    %v2342 = vpop.f32.mrb[0].mxu0
    %v2343 = vadd.f32 %v2290, %v2342
    %v2344 = vpop.f32.mrb[0].mxu0
    %v2345 = vadd.f32 %v2292, %v2344
    %2346 = vdwg.mxu0
    %2347 = vst [vmem:[#allocation2] sm:$0xff] %v2223
    %2348 = vst [vmem:[#allocation2 + $0x8] sm:$0xff] %v2225
    %2349 = vst [vmem:[#allocation2 + $0x10] sm:$0xff] %v2329
    %2350 = vst [vmem:[#allocation2 + $0x18] sm:$0xff] %v2331
    %2351 = vst [vmem:[#allocation2 + $0x20] sm:$0xff] %v2227
    %2352 = vst [vmem:[#allocation2 + $0x28] sm:$0xff] %v2229
    %2353 = vst [vmem:[#allocation2 + $0x30] sm:$0xff] %v2333
    %2354 = vst [vmem:[#allocation2 + $0x38] sm:$0xff] %v2335
    %2355 = vst [vmem:[#allocation2 + $0x40] sm:$0xff] %v2233
    %2356 = vst [vmem:[#allocation2 + $0x48] sm:$0xff] %v2235
    %2357 = vst [vmem:[#allocation2 + $0x50] sm:$0xff] %v2339
    %2358 = vst [vmem:[#allocation2 + $0x58] sm:$0xff] %v2341
    %2359 = vst [vmem:[#allocation2 + $0x60] sm:$0xff] %v2237
    %2360 = vst [vmem:[#allocation2 + $0x68] sm:$0xff] %v2239
    %2361 = vst [vmem:[#allocation2 + $0x70] sm:$0xff] %v2343
    %2362 = vst [vmem:[#allocation2 + $0x78] sm:$0xff] %v2345
    // Predicated region
    $region42: #{tpu_custom_call.1} parent=1 // pred_check
      _
    $region43: #{tpu_custom_call.1} parent=1 // pred_check_branch
      %2364 = sbr.rel (0) target = $region45
    $region44: #{tpu_custom_call.1} parent=1 // pred_region
      %s2366 = ssub.s32 2048, 2048
      %2367 = vsyncadd [#allocation3], %s2366
      %s2368 = sshll.u32 [#allocation2], 4
      %s2369 = int_to_ptr.vmem [resolvable:$true] %s2368
      %2374 = dma.vmem_to_hbm [thread:$0]  %s2369, 2048, %s10, [#allocation3], 512, 512, 32
    $region45: #{tpu_custom_call.1} parent=1 // pred_fallthru
      _
    // Predicated region
    $region46: #{tpu_custom_call.1} parent=1 // pred_check
      _
    $region47: #{tpu_custom_call.1} parent=1 // pred_check_branch
      %2376 = sbr.rel (0) target = $region49
    $region48: #{tpu_custom_call.1} parent=1 // pred_region
      %2377 = dma.done [#allocation3], 2048
    $region49: #{tpu_custom_call.1} parent=1 // pred_fallthru
      _
    %2378 = vsyncpa [#allocation3], 1

</llo_original>
